<compile_context>
chip_gen: v6e
topology: v6e:2x2x1
jax: 0.10.0
libtpu: 0.0.40
codegen_flags: <defaults>
</compile_context>

<pallas_src>
import functools
import math

import jax
import jax.numpy as jnp
from jax.experimental import pallas as pl
from jax.experimental.pallas import tpu as pltpu

PI = 3.1415926535          # the module's hand-written pi (feeds the filter cos)
LN_EPS = 1e-5

# rows of the packed "small params" (16, D) slab
ROW_I2T_B, ROW_T2I_B = 0, 1
ROW_T_B1, ROW_T_B2, ROW_I_B1, ROW_I_B2 = 2, 3, 4, 5
ROW_T_G1, ROW_T_BE1, ROW_T_G2, ROW_T_BE2 = 6, 7, 8, 9
ROW_I_G1, ROW_I_BE1, ROW_I_G2, ROW_I_BE2 = 10, 11, 12, 13
N_SMALL = 16

# slots of the packed (6, D, D) weight slab
W_I2T, W_T2I, W_T_FF1, W_T_FF2, W_I_FF1, W_I_FF2 = range(6)


def _round_up(x, m):
    return (x + m - 1) // m * m


# ----------------------------------------------------------------------------
# Pallas kernel: one (batch-block, layer) grid step of the fused FtBlock.
# ----------------------------------------------------------------------------
def ft_block_kernel(text_ref, image_ref,
                    fwd_t_ref, inv_t_ref, fwd_i_ref, inv_i_ref,
                    filt_t_ref, filt_i_ref, sel_i2t_ref, sel_t2i_ref,
                    w_ref, small_ref,
                    text_out_ref, image_out_ref,
                    *, s_true, n_true, s_pad, n_pad):
    layer = pl.program_id(1)

    # Layer 0: seed the VMEM-resident output block with the HBM input.  For
    # layer > 0 the output block (same block index across the 'arbitrary'
    # layer axis) still holds the previous layer's result, so activations
    # never round-trip through HBM between layers.
    @pl.when(layer == 0)
    def _():
        text_out_ref[...] = text_ref[...]
        image_out_ref[...] = image_ref[...]

    x_t = text_out_ref[...]                       # (Bb, S, D) f32
    x_i = image_out_ref[...]                      # (Bb, N, D) f32
    bb, s_len, d = x_t.shape
    n_len = x_i.shape[1]

    sm = small_ref[0]                             # (16, D) packed small params

    def row(i):                                   # (1, D) row of the slab
        return sm[i:i + 1, :]

    def mxu(a, b):                                # bf16 operands, f32 accumulate
        return jnp.dot(a.astype(jnp.bfloat16), b.astype(jnp.bfloat16),
                       preferred_element_type=jnp.float32)

    # ---- batch <-> lane folding helpers (no per-b matmuls anywhere) --------
    def to_slab(x3):                              # (Bb, L, D) -> (L, Bb*D)
        if bb == 1:
            return x3[0]
        return jnp.concatenate([x3[b] for b in range(bb)], axis=-1)

    def slab_to_rows(slab):                       # (L, Bb*D) -> (Bb*L, D)
        if bb == 1:
            return slab
        return jnp.concatenate(
            [slab[:, b * d:(b + 1) * d] for b in range(bb)], axis=0)

    def rows_to_lane(v):                          # (Bb, D) -> (1, Bb*D)
        if bb == 1:
            return v
        return jnp.concatenate([v[b:b + 1, :] for b in range(bb)], axis=-1)

    def lane_tile(a2d):                           # (R, D) -> (R, Bb*D), f32
        a2d = a2d.astype(jnp.float32)
        if bb == 1:
            return a2d
        return jnp.concatenate([a2d] * bb, axis=-1)

    # ---- rfft (ortho): ONE stacked [re; im] DFT matmul per modality --------
    x_t_slab = to_slab(x_t)                       # (S, Bb*D)
    x_i_slab = to_slab(x_i)                       # (N, Bb*D)
    # Forward DFT stays f32: the filter squares the spectrum, which would
    # amplify bf16 quantisation error quadratically.
    spec_t = jnp.dot(fwd_t_ref[...], x_t_slab, preferred_element_type=jnp.float32)
    spec_i = jnp.dot(fwd_i_ref[...], x_i_slab, preferred_element_type=jnp.float32)
    t_re, t_im = spec_t[:s_pad], spec_t[s_pad:]   # (s_pad, Bb*D)
    i_re, i_im = spec_i[:n_pad], spec_i[n_pad:]   # (n_pad, Bb*D)

    # ---- filter bank, pre-combined host-side (sum over k is linear) --------
    def apply_filter(re, im, inv_len, filt):      # filt: (2, lp, D) bf16
        fr, fi = lane_tile(filt[0]), lane_tile(filt[1])
        pr = (re * re - im * im) * inv_len        # Re(x*x)/len
        pim = (2.0 * re * im) * inv_len           # Im(x*x)/len
        return pr * fr - pim * fi, pr * fi + pim * fr

    t_re, t_im = apply_filter(t_re, t_im, 1.0 / s_true, filt_t_ref[0])
    i_re, i_im = apply_filter(i_re, i_im, 1.0 / n_true, filt_i_ref[0])

    # ---- image -> text gate: freq-mean of Re(spec*select) then 1x1 conv ----
    # (zero-padded frequency rows contribute 0, so sum/true_len == torch mean)
    sel = sel_i2t_ref[0]                                          # (2, n_pad, D)
    m_i = jnp.sum(i_re * lane_tile(sel[0]) - i_im * lane_tile(sel[1]),
                  axis=0, keepdims=True) * (1.0 / n_true)         # (1, Bb*D)
    gate_t = mxu(slab_to_rows(m_i), w_ref[0, W_I2T]) + row(ROW_I2T_B)  # (Bb, D)
    g_t = rows_to_lane(gate_t)                                    # (1, Bb*D)
    t_re, t_im = t_re * g_t, t_im * g_t           # gate the text spectrum

    # ---- text -> image gate (driven by the GATED text spectrum, as in the
    #      module's forward order) -------------------------------------------
    sel = sel_t2i_ref[0]                                          # (2, s_pad, D)
    m_t = jnp.sum(t_re * lane_tile(sel[0]) - t_im * lane_tile(sel[1]),
                  axis=0, keepdims=True) * (1.0 / s_true)         # (1, Bb*D)
    gate_i = mxu(slab_to_rows(m_t), w_ref[0, W_T2I]) + row(ROW_T2I_B)  # (Bb, D)
    g_i = rows_to_lane(gate_i)
    i_re, i_im = i_re * g_i, i_im * g_i

    # ---- irfft (ortho, ONE stacked inverse DFT matmul) + residual ----------
    t_time = mxu(inv_t_ref[...],
                 jnp.concatenate([t_re, t_im], axis=0)) + x_t_slab  # (S, Bb*D)
    i_time = mxu(inv_i_ref[...],
                 jnp.concatenate([i_re, i_im], axis=0)) + x_i_slab  # (N, Bb*D)

    t_rows = slab_to_rows(t_time)                 # (Bb*S, D)
    i_rows = slab_to_rows(i_time)                 # (Bb*N, D)

    # ---- AddNorm (LN -> Linear/GELU/Linear + residual -> LN) on 2-D slabs --
    def layer_norm(x, g_row, b_row):
        mu = jnp.mean(x, axis=-1, keepdims=True)
        xc = x - mu
        var = jnp.mean(xc * xc, axis=-1, keepdims=True)
        return xc * jax.lax.rsqrt(var + LN_EPS) * g_row + b_row

    def gelu_exact(x):                            # matches torch nn.GELU()
        return 0.5 * x * (1.0 + jax.lax.erf(x * (1.0 / math.sqrt(2.0))))

    def add_norm(x, w1, b1, w2, b2, g1, be1, g2, be2):
        x = layer_norm(x, row(g1), row(be1))
        h = gelu_exact(mxu(x, w_ref[0, w1]) + row(b1))
        h = mxu(h, w_ref[0, w2]) + row(b2)
        return layer_norm(h + x, row(g2), row(be2))

    t_out = add_norm(t_rows, W_T_FF1, ROW_T_B1, W_T_FF2, ROW_T_B2,
                     ROW_T_G1, ROW_T_BE1, ROW_T_G2, ROW_T_BE2)
    i_out = add_norm(i_rows, W_I_FF1, ROW_I_B1, W_I_FF2, ROW_I_B2,
                     ROW_I_G1, ROW_I_BE1, ROW_I_G2, ROW_I_BE2)

    text_out_ref[...] = t_out.reshape(bb, s_len, d)
    image_out_ref[...] = i_out.reshape(bb, n_len, d)


# ----------------------------------------------------------------------------
# Host-side preparation: stacked DFT matrices, combined filters, packed params.
# ----------------------------------------------------------------------------
def make_stacked_dft(L, lf_pad):
    """Exact rfft/irfft (norm='ortho') as stacked [re; im] matrices.

    Forward matrix kept in f32 (spectrum gets squared downstream); inverse in
    bf16 (plain MXU operand).
    """
    lf = L // 2 + 1
    t = jnp.arange(L, dtype=jnp.float32)
    f = jnp.arange(lf, dtype=jnp.float32)
    scale = 1.0 / math.sqrt(float(L))

    ang = 2.0 * jnp.pi * f[:, None] * t[None, :] / L              # (lf, L)
    pad_r = ((0, lf_pad - lf), (0, 0))
    fwd = jnp.concatenate([jnp.pad(jnp.cos(ang) * scale, pad_r),
                           jnp.pad(-jnp.sin(ang) * scale, pad_r)], axis=0)

    w = jnp.array([1.0 if (ff == 0 or (L % 2 == 0 and ff == L // 2)) else 2.0
                   for ff in range(lf)], dtype=jnp.float32)
    ang2 = 2.0 * jnp.pi * t[:, None] * f[None, :] / L             # (L, lf)
    pad_c = ((0, 0), (0, lf_pad - lf))
    inv = jnp.concatenate([jnp.pad(jnp.cos(ang2) * w[None, :] * scale, pad_c),
                           jnp.pad(-jnp.sin(ang2) * w[None, :] * scale, pad_c)],
                          axis=1)
    return fwd.astype(jnp.float32), inv.astype(jnp.bfloat16)


def pack_block_params(layer_params, *, num_filter, s_f, n_f, s_pad, n_pad,
                      d_model):
    # NOTE: the coefficient keeps the original module's operator precedence:
    # (2k+1) * pi / 2 * num_filter  ==  (2k+1)*pi*num_filter/2
    coef = jnp.array([math.cos((2 * (k + 1) - 1) * PI / 2 * num_filter)
                      for k in range(num_filter)], dtype=jnp.float32)

    def pad_freq(a, lf, lf_pad):              # (2, lf, D) -> (2, lf_pad, D)
        return jnp.pad(a, ((0, 0), (0, lf_pad - lf), (0, 0)))

    filt_t, filt_i, sel_i2t, sel_t2i, wmats, small = [], [], [], [], [], []
    for p in layer_params:
        # exact host-side combination of the filter bank (linear in the bank)
        filt_t.append(pad_freq(jnp.tensordot(coef, p['tfb'], axes=([0], [1])),
                               s_f, s_pad))
        filt_i.append(pad_freq(jnp.tensordot(coef, p['ifb'], axes=([0], [1])),
                               n_f, n_pad))
        sel_i2t.append(pad_freq(p['i2t_sp'], n_f, n_pad))
        sel_t2i.append(pad_freq(p['t2i_sp'], s_f, s_pad))
        wmats.append(jnp.stack([p['i2t_w'], p['t2i_w'],
                                p['t_w1'], p['t_w2'], p['i_w1'], p['i_w2']]))
        rows = jnp.zeros((N_SMALL, d_model), jnp.float32)
        rows = rows.at[ROW_I2T_B].set(p['i2t_b'][0])
        rows = rows.at[ROW_T2I_B].set(p['t2i_b'][0])
        rows = rows.at[ROW_T_B1].set(p['t_b1'][0])
        rows = rows.at[ROW_T_B2].set(p['t_b2'][0])
        rows = rows.at[ROW_I_B1].set(p['i_b1'][0])
        rows = rows.at[ROW_I_B2].set(p['i_b2'][0])
        rows = rows.at[ROW_T_G1].set(p['t_ln1'][0])
        rows = rows.at[ROW_T_BE1].set(p['t_ln1'][1])
        rows = rows.at[ROW_T_G2].set(p['t_ln2'][0])
        rows = rows.at[ROW_T_BE2].set(p['t_ln2'][1])
        rows = rows.at[ROW_I_G1].set(p['i_ln1'][0])
        rows = rows.at[ROW_I_BE1].set(p['i_ln1'][1])
        rows = rows.at[ROW_I_G2].set(p['i_ln2'][0])
        rows = rows.at[ROW_I_BE2].set(p['i_ln2'][1])
        small.append(rows)

    # Filter / selector / weight slabs stored bf16: halves the per-layer HBM
    # stream and their VMEM double-buffer footprint (dominant on v7x's 64 MiB).
    return dict(
        filt_t=jnp.stack(filt_t).astype(jnp.bfloat16),
        filt_i=jnp.stack(filt_i).astype(jnp.bfloat16),
        sel_i2t=jnp.stack(sel_i2t).astype(jnp.bfloat16),
        sel_t2i=jnp.stack(sel_t2i).astype(jnp.bfloat16),
        wmats=jnp.stack(wmats).astype(jnp.bfloat16),
        small=jnp.stack(small))


def _pick_block_b(B, S, N, D):
    """Fill the 256-wide MXU (v6e/v7x) on both the DFT (block_b*D columns) and
    FFN (block_b*min(S,N) rows) matmuls, but keep >= 2 batch grid steps when
    possible so both v7x TensorCores stay busy."""
    want = max(-(-256 // D), -(-256 // min(S, N)))
    divs = [q for q in range(1, B + 1) if B % q == 0]
    fit = [q for q in divs if q <= want]
    block_b = fit[-1] if fit else 1
    if B // block_b < 2:
        smaller = [q for q in divs if B // q >= 2]
        if smaller:
            block_b = smaller[-1]
    return block_b


def ft_block_pallas(text, image, layer_params, *, num_filter, block_b=None,
                    vmem_limit_bytes=None):
    B, S, D = text.shape
    _, N, _ = image.shape
    s_f, n_f = S // 2 + 1, N // 2 + 1
    # frequency dims padded to multiples of 16: stacked [re; im] bf16 operands
    # then land on full packed-sublane tiles (no hidden relayout before MXU)
    s_pad, n_pad = _round_up(s_f, 16), _round_up(n_f, 16)
    num_layer = len(layer_params)

    if block_b is None:
        block_b = _pick_block_b(B, S, N, D)
    block_b = min(block_b, B)
    assert B % block_b == 0, "batch must be divisible by block_b"
    assert S % 8 == 0 and N % 8 == 0, "sequence lengths must be multiples of 8"

    fwd_t, inv_t = make_stacked_dft(S, s_pad)
    fwd_i, inv_i = make_stacked_dft(N, n_pad)
    packed = pack_block_params(layer_params, num_filter=num_filter,
                               s_f=s_f, n_f=n_f, s_pad=s_pad, n_pad=n_pad,
                               d_model=D)

    # ---- VMEM budget: derive a limit that also fits v7x's 64 MiB VMEM ------
    act_blk = 4 * block_b * (S + N) * D                       # f32 in/out blocks
    spec_tmp = 4 * 2 * (s_pad + n_pad) * block_b * D          # f32 spectra temps
    par_layer = (2 * 2 * 2 * (s_pad + n_pad) * D              # filt+sel (bf16)
                 + 2 * 6 * D * D + 4 * N_SMALL * D)           # wmats bf16, small f32
    dft = (4 * 2 * s_pad * S + 2 * 2 * s_pad * S
           + 4 * 2 * n_pad * N + 2 * 2 * n_pad * N)
    need = 4 * act_blk + 4 * par_layer + 2 * dft + 6 * spec_tmp
    if vmem_limit_bytes is None:
        vmem_limit_bytes = int(min(max(2 * need, 16 << 20), 40 << 20))
        vmem_limit_bytes = max(vmem_limit_bytes, int(1.5 * need))

    kernel = functools.partial(ft_block_kernel,
                               s_true=float(s_f), n_true=float(n_f),
                               s_pad=s_pad, n_pad=n_pad)

    grid = (B // block_b, num_layer)   # layer axis innermost -> VMEM carry

    def batched(shape):                # activations, blocked over batch only
        return pl.BlockSpec((block_b,) + tuple(shape[1:]),
                            lambda b, l: (b, 0, 0))

    def per_layer(shape):              # stacked per-layer parameters
        nd = len(shape)
        return pl.BlockSpec((1,) + tuple(shape[1:]),
                            lambda b, l, _nd=nd: (l,) + (0,) * (_nd - 1))

    def shared(shape):                 # layer-independent constants (DFT mats)
        nd = len(shape)
        return pl.BlockSpec(tuple(shape),
                            lambda b, l, _nd=nd: (0,) * _nd)

    in_specs = [
        batched(text.shape), batched(image.shape),
        shared(fwd_t.shape), shared(inv_t.shape),
        shared(fwd_i.shape), shared(inv_i.shape),
        per_layer(packed['filt_t'].shape), per_layer(packed['filt_i'].shape),
        per_layer(packed['sel_i2t'].shape), per_layer(packed['sel_t2i'].shape),
        per_layer(packed['wmats'].shape), per_layer(packed['small'].shape),
    ]
    out_specs = [batched(text.shape), batched(image.shape)]
    out_shape = (jax.ShapeDtypeStruct((B, S, D), jnp.float32),
                 jax.ShapeDtypeStruct((B, N, D), jnp.float32))

    # advisory cost estimate so XLA schedules the surrounding graph sensibly
    flops = num_layer * B * (4 * (2 * s_pad) * S * D + 4 * (2 * n_pad) * N * D
                             + 4 * S * D * D + 4 * N * D * D + 4 * D * D)
    transcend = num_layer * B * (S + N) * D
    bytes_acc = 2 * 4 * B * (S + N) * D + num_layer * par_layer + dft
    cost = pl.CostEstimate(flops=int(flops), transcendentals=int(transcend),
                           bytes_accessed=int(bytes_acc))

    return pl.pallas_call(
        kernel,
        out_shape=out_shape,
        grid_spec=pltpu.PrefetchScalarGridSpec(
            num_scalar_prefetch=0,
            grid=grid,
            in_specs=in_specs,
            out_specs=out_specs),
        compiler_params=pltpu.CompilerParams(
            dimension_semantics=("parallel", "arbitrary"),
            vmem_limit_bytes=int(vmem_limit_bytes)),
        input_output_aliases={0: 0, 1: 1},   # text->text_out, image->image_out
        cost_estimate=cost,
    )(text, image, fwd_t, inv_t, fwd_i, inv_i,
      packed['filt_t'], packed['filt_i'], packed['sel_i2t'], packed['sel_t2i'],
      packed['wmats'], packed['small'])


# ----------------------------------------------------------------------------
# Deterministic synthetic parameter init (shapes follow FtLayer.__init__).
# use_bank=True is the default, so text_weight / image_weight are unused.
# ----------------------------------------------------------------------------
def init_ft_layer_params(key, d_model, s_f, n_f, num_filter):
    ks = jax.random.split(key, 16)
    wscale = 1.0 / math.sqrt(d_model)
    bstd = 0.1
    ln = lambda: jnp.stack([jnp.ones((d_model,), jnp.float32),
                            jnp.zeros((d_model,), jnp.float32)])
    return {
        'tfb':    jax.random.normal(ks[0], (2, num_filter, s_f, d_model), jnp.float32),
        'ifb':    jax.random.normal(ks[1], (2, num_filter, n_f, d_model), jnp.float32),
        'i2t_sp': jax.random.normal(ks[2], (2, n_f, d_model), jnp.float32),
        'i2t_w':  jax.random.normal(ks[3], (d_model, d_model), jnp.float32) * wscale,
        'i2t_b':  jax.random.normal(ks[4], (1, d_model), jnp.float32) * bstd,
        't2i_sp': jax.random.normal(ks[5], (2, s_f, d_model), jnp.float32),
        't2i_w':  jax.random.normal(ks[6], (d_model, d_model), jnp.float32) * wscale,
        't2i_b':  jax.random.normal(ks[7], (1, d_model), jnp.float32) * bstd,
        't_ln1': ln(), 't_ln2': ln(), 'i_ln1': ln(), 'i_ln2': ln(),
        't_w1': jax.random.normal(ks[8],  (d_model, d_model), jnp.float32) * wscale,
        't_b1': jax.random.normal(ks[9],  (1, d_model), jnp.float32) * bstd,
        't_w2': jax.random.normal(ks[10], (d_model, d_model), jnp.float32) * wscale,
        't_b2': jax.random.normal(ks[11], (1, d_model), jnp.float32) * bstd,
        'i_w1': jax.random.normal(ks[12], (d_model, d_model), jnp.float32) * wscale,
        'i_b1': jax.random.normal(ks[13], (1, d_model), jnp.float32) * bstd,
        'i_w2': jax.random.normal(ks[14], (d_model, d_model), jnp.float32) * wscale,
        'i_b2': jax.random.normal(ks[15], (1, d_model), jnp.float32) * bstd,
    }


# ----------------------------------------------------------------------------
# Pure-JAX reference (mirrors the PyTorch forward) for the correctness check.
# Reference matmuls use HIGHEST precision so it is an accurate f32 baseline.
# ----------------------------------------------------------------------------
def ft_layer_reference(text, image, p, *, num_filter):
    B, S, D = text.shape
    _, N, _ = image.shape
    s_f, n_f = S // 2 + 1, N // 2 + 1
    hi = jax.lax.Precision.HIGHEST

    tf = jnp.fft.rfft(text, axis=1, norm='ortho')
    imf = jnp.fft.rfft(image, axis=1, norm='ortho')

    def filt(x, length, fb):
        power = x * x / length
        acc = jnp.zeros_like(x)
        for k in range(num_filter):
            c = math.cos((2 * (k + 1) - 1) * PI / 2 * num_filter)
            acc = acc + power * fb[k] * c
        return acc

    tf = filt(tf, s_f, p['tfb'][0] + 1j * p['tfb'][1])
    imf = filt(imf, n_f, p['ifb'][0] + 1j * p['ifb'][1])

    sp = p['i2t_sp'][0] + 1j * p['i2t_sp'][1]
    g = jnp.real(imf * sp).mean(axis=1, keepdims=True)
    gate_t = jnp.matmul(g, p['i2t_w'], precision=hi) + p['i2t_b']
    tf = tf * gate_t

    sp = p['t2i_sp'][0] + 1j * p['t2i_sp'][1]
    g = jnp.real(tf * sp).mean(axis=1, keepdims=True)
    gate_i = jnp.matmul(g, p['t2i_w'], precision=hi) + p['t2i_b']
    imf = imf * gate_i

    t_time = jnp.fft.irfft(tf, n=S, axis=1, norm='ortho')
    i_time = jnp.fft.irfft(imf, n=N, axis=1, norm='ortho')

    def layer_norm(x, gb):
        mu = x.mean(-1, keepdims=True)
        var = ((x - mu) ** 2).mean(-1, keepdims=True)
        return (x - mu) * jax.lax.rsqrt(var + LN_EPS) * gb[0] + gb[1]

    def add_norm(x, ln1, w1, b1, w2, b2, ln2):
        x = layer_norm(x, ln1)
        h = jax.nn.gelu(jnp.matmul(x, w1, precision=hi) + b1, approximate=False)
        h = jnp.matmul(h, w2, precision=hi) + b2
        return layer_norm(h + x, ln2)

    t = add_norm(t_time + text, p['t_ln1'], p['t_w1'], p['t_b1'],
                 p['t_w2'], p['t_b2'], p['t_ln2'])
    i = add_norm(i_time + image, p['i_ln1'], p['i_w1'], p['i_b1'],
                 p['i_w2'], p['i_b2'], p['i_ln2'])
    return t, i


def ft_block_reference(text, image, layer_params, *, num_filter):
    for p in layer_params:
        text, image = ft_layer_reference(text, image, p, num_filter=num_filter)
    return text, image


# ----------------------------------------------------------------------------
if __name__ == "__main__":
    B, S, D = 4, 8, 32          # text: (B, S, D)
    N = 16                      # image: (B, N, D), N = h*w
    num_layer, num_filter = 2, 2
    s_f, n_f = S // 2 + 1, N // 2 + 1

    key = jax.random.PRNGKey(0)
    k_t, k_i, k_p = jax.random.split(key, 3)
    text = jax.random.normal(k_t, (B, S, D), jnp.float32)
    image = jax.random.normal(k_i, (B, N, D), jnp.float32)

    layer_params = [init_ft_layer_params(k, D, s_f, n_f, num_filter)
                    for k in jax.random.split(k_p, num_layer)]

    # reference first (inputs are never mutated, but this keeps the check
    # independent of the input/output aliasing used by the pallas_call)
    t_ref, i_ref = ft_block_reference(text, image, layer_params,
                                      num_filter=num_filter)
    t_ref = jax.block_until_ready(t_ref)

    t_out, i_out = ft_block_pallas(text, image, layer_params,
                                   num_filter=num_filter)
    t_out = jax.block_until_ready(t_out)
    i_out = jax.block_until_ready(i_out)
    assert t_out.shape == (B, S, D) and i_out.shape == (B, N, D)

    # Tolerances account for bf16 MXU operands / bf16 filter+selector params
    # (f32 accumulation, f32 forward DFT) vs the f32/HIGHEST reference;
    # structural bugs give O(0.1-1) deviations.
    def check(name, out, ref):
        max_abs = float(jnp.max(jnp.abs(out - ref)))
        rel_fro = float(jnp.linalg.norm(out - ref) / jnp.linalg.norm(ref))
        ok = bool(jnp.allclose(out, ref, atol=5e-2, rtol=5e-2)) and rel_fro < 3e-2
        assert ok, f"{name} mismatch: max_abs={max_abs:.4e} rel_fro={rel_fro:.4e}"

    check("text", t_out, t_ref)
    check("image", i_out, i_ref)
    print("KERNEL_OK")
</pallas_src>

<mosaic_0001>
module attributes {stable_mosaic.version = 11 : i64} {
  func.func @ft_block_kernel(%arg0: i32, %arg1: i32, %arg2: memref<2x8x32xf32, #tpu.memory_space<vmem>>, %arg3: memref<2x16x32xf32, #tpu.memory_space<vmem>>, %arg4: memref<32x8xf32, #tpu.memory_space<vmem>>, %arg5: memref<8x32xbf16, #tpu.memory_space<vmem>>, %arg6: memref<32x16xf32, #tpu.memory_space<vmem>>, %arg7: memref<16x32xbf16, #tpu.memory_space<vmem>>, %arg8: memref<1x2x16x32xbf16, #tpu.memory_space<vmem>>, %arg9: memref<1x2x16x32xbf16, #tpu.memory_space<vmem>>, %arg10: memref<1x2x16x32xbf16, #tpu.memory_space<vmem>>, %arg11: memref<1x2x16x32xbf16, #tpu.memory_space<vmem>>, %arg12: memref<1x6x32x32xbf16, #tpu.memory_space<vmem>>, %arg13: memref<1x16x32xf32, #tpu.memory_space<vmem>>, %arg14: memref<2x8x32xf32, #tpu.memory_space<vmem>>, %arg15: memref<2x16x32xf32, #tpu.memory_space<vmem>>) attributes {dimension_semantics = [#tpu.dimension_semantics<parallel>, #tpu.dimension_semantics<arbitrary>], iteration_bounds = array<i64: 2, 2>, scalar_prefetch = 0 : i64, scratch_operands = 0 : i64, tpu.core_type = #tpu.core_type<tc>, window_params = [{transform_indices = @transform_0, window_bounds = array<i64: 2, 8, 32>}, {transform_indices = @transform_1, window_bounds = array<i64: 2, 16, 32>}, {pipeline_mode = #tpu.pipeline_mode<synchronous>, transform_indices = @transform_2, window_bounds = array<i64: 32, 8>}, {pipeline_mode = #tpu.pipeline_mode<synchronous>, transform_indices = @transform_3, window_bounds = array<i64: 8, 32>}, {pipeline_mode = #tpu.pipeline_mode<synchronous>, transform_indices = @transform_4, window_bounds = array<i64: 32, 16>}, {pipeline_mode = #tpu.pipeline_mode<synchronous>, transform_indices = @transform_5, window_bounds = array<i64: 16, 32>}, {transform_indices = @transform_6, window_bounds = array<i64: 1, 2, 16, 32>}, {transform_indices = @transform_7, window_bounds = array<i64: 1, 2, 16, 32>}, {transform_indices = @transform_8, window_bounds = array<i64: 1, 2, 16, 32>}, {transform_indices = @transform_9, window_bounds = array<i64: 1, 2, 16, 32>}, {transform_indices = @transform_10, window_bounds = array<i64: 1, 6, 32, 32>}, {transform_indices = @transform_11, window_bounds = array<i64: 1, 16, 32>}, {transform_indices = @transform_12, window_bounds = array<i64: 2, 8, 32>}, {transform_indices = @transform_13, window_bounds = array<i64: 2, 16, 32>}]} {
    %c0_i32 = arith.constant 0 : i32
    %0 = arith.cmpi eq, %arg1, %c0_i32 : i32
    %1 = arith.extui %0 : i1 to i32
    %c0_i32_0 = arith.constant 0 : i32
    %2 = arith.cmpi ne, %1, %c0_i32_0 : i32
    scf.if %2 {
      %c0_103 = arith.constant 0 : index
      %c0_104 = arith.constant 0 : index
      %c0_105 = arith.constant 0 : index
      %299 = vector.load %arg2[%c0_103, %c0_104, %c0_105] : memref<2x8x32xf32, #tpu.memory_space<vmem>>, vector<2x8x32xf32>
      %c0_106 = arith.constant 0 : index
      %c0_107 = arith.constant 0 : index
      %c0_108 = arith.constant 0 : index
      %300 = vector.load %arg14[%c0_106, %c0_107, %c0_108] : memref<2x8x32xf32, #tpu.memory_space<vmem>>, vector<2x8x32xf32>
      tpu.vector_store %arg14[%c0_106, %c0_107, %c0_108], %299 {strides = array<i32>} : memref<2x8x32xf32, #tpu.memory_space<vmem>>, vector<2x8x32xf32>,
      %c0_109 = arith.constant 0 : index
      %c0_110 = arith.constant 0 : index
      %c0_111 = arith.constant 0 : index
      %301 = vector.load %arg3[%c0_109, %c0_110, %c0_111] : memref<2x16x32xf32, #tpu.memory_space<vmem>>, vector<2x16x32xf32>
      %c0_112 = arith.constant 0 : index
      %c0_113 = arith.constant 0 : index
      %c0_114 = arith.constant 0 : index
      %302 = vector.load %arg15[%c0_112, %c0_113, %c0_114] : memref<2x16x32xf32, #tpu.memory_space<vmem>>, vector<2x16x32xf32>
      tpu.vector_store %arg15[%c0_112, %c0_113, %c0_114], %301 {strides = array<i32>} : memref<2x16x32xf32, #tpu.memory_space<vmem>>, vector<2x16x32xf32>,
    } else {
    }
    %c0 = arith.constant 0 : index
    %c0_1 = arith.constant 0 : index
    %c0_2 = arith.constant 0 : index
    %3 = vector.load %arg14[%c0, %c0_1, %c0_2] : memref<2x8x32xf32, #tpu.memory_space<vmem>>, vector<2x8x32xf32>
    %c0_3 = arith.constant 0 : index
    %c0_4 = arith.constant 0 : index
    %c0_5 = arith.constant 0 : index
    %4 = vector.load %arg15[%c0_3, %c0_4, %c0_5] : memref<2x16x32xf32, #tpu.memory_space<vmem>>, vector<2x16x32xf32>
    %c0_6 = arith.constant 0 : index
    %c0_7 = arith.constant 0 : index
    %c0_8 = arith.constant 0 : index
    %5 = vector.load %arg13[%c0_6, %c0_7, %c0_8] : memref<1x16x32xf32, #tpu.memory_space<vmem>>, vector<1x16x32xf32>
    %6 = vector.shape_cast %5 : vector<1x16x32xf32> to vector<16x32xf32>
    %7 = vector.extract_strided_slice %3 {offsets = [0, 0, 0], sizes = [1, 8, 32], strides = [1, 1, 1]} : vector<2x8x32xf32> to vector<1x8x32xf32>
    %8 = vector.shape_cast %7 : vector<1x8x32xf32> to vector<8x32xf32>
    %9 = vector.extract_strided_slice %3 {offsets = [1, 0, 0], sizes = [1, 8, 32], strides = [1, 1, 1]} : vector<2x8x32xf32> to vector<1x8x32xf32>
    %10 = vector.shape_cast %9 : vector<1x8x32xf32> to vector<8x32xf32>
    %11 = tpu.concatenate %8, %10 in 1 : vector<8x32xf32>, vector<8x32xf32> -> vector<8x64xf32>
    %12 = vector.extract_strided_slice %4 {offsets = [0, 0, 0], sizes = [1, 16, 32], strides = [1, 1, 1]} : vector<2x16x32xf32> to vector<1x16x32xf32>
    %13 = vector.shape_cast %12 : vector<1x16x32xf32> to vector<16x32xf32>
    %14 = vector.extract_strided_slice %4 {offsets = [1, 0, 0], sizes = [1, 16, 32], strides = [1, 1, 1]} : vector<2x16x32xf32> to vector<1x16x32xf32>
    %15 = vector.shape_cast %14 : vector<1x16x32xf32> to vector<16x32xf32>
    %16 = tpu.concatenate %13, %15 in 1 : vector<16x32xf32>, vector<16x32xf32> -> vector<16x64xf32>
    %c0_9 = arith.constant 0 : index
    %c0_10 = arith.constant 0 : index
    %17 = vector.load %arg4[%c0_9, %c0_10] : memref<32x8xf32, #tpu.memory_space<vmem>>, vector<32x8xf32>
    %cst = arith.constant dense<0.000000e+00> : vector<32x64xf32>
    %18 = tpu.matmul %17, %11, %cst {dimension_numbers = #tpu.dot_dimension_numbers<[1], [0], [0], [1], [0, 0, 1, 1], [], []>} : vector<32x8xf32>, vector<8x64xf32>, vector<32x64xf32> -> vector<32x64xf32>
    %c0_11 = arith.constant 0 : index
    %c0_12 = arith.constant 0 : index
    %19 = vector.load %arg6[%c0_11, %c0_12] : memref<32x16xf32, #tpu.memory_space<vmem>>, vector<32x16xf32>
    %cst_13 = arith.constant dense<0.000000e+00> : vector<32x64xf32>
    %20 = tpu.matmul %19, %16, %cst_13 {dimension_numbers = #tpu.dot_dimension_numbers<[1], [0], [0], [1], [0, 0, 1, 1], [], []>} : vector<32x16xf32>, vector<16x64xf32>, vector<32x64xf32> -> vector<32x64xf32>
    %21 = vector.extract_strided_slice %18 {offsets = [0, 0], sizes = [16, 64], strides = [1, 1]} : vector<32x64xf32> to vector<16x64xf32>
    %22 = vector.extract_strided_slice %18 {offsets = [16, 0], sizes = [16, 64], strides = [1, 1]} : vector<32x64xf32> to vector<16x64xf32>
    %23 = vector.extract_strided_slice %20 {offsets = [0, 0], sizes = [16, 64], strides = [1, 1]} : vector<32x64xf32> to vector<16x64xf32>
    %24 = vector.extract_strided_slice %20 {offsets = [16, 0], sizes = [16, 64], strides = [1, 1]} : vector<32x64xf32> to vector<16x64xf32>
    %c0_14 = arith.constant 0 : index
    %c0_15 = arith.constant 0 : index
    %c0_16 = arith.constant 0 : index
    %c0_17 = arith.constant 0 : index
    %25 = vector.load %arg8[%c0_14, %c0_15, %c0_16, %c0_17] : memref<1x2x16x32xbf16, #tpu.memory_space<vmem>>, vector<1x2x16x32xbf16>
    %26 = vector.shape_cast %25 : vector<1x2x16x32xbf16> to vector<2x16x32xbf16>
    %27 = vector.extract_strided_slice %26 {offsets = [0, 0, 0], sizes = [1, 16, 32], strides = [1, 1, 1]} : vector<2x16x32xbf16> to vector<1x16x32xbf16>
    %28 = vector.shape_cast %27 : vector<1x16x32xbf16> to vector<16x32xbf16>
    %29 = arith.extf %28 : vector<16x32xbf16> to vector<16x32xf32>
    %30 = tpu.concatenate %29, %29 in 1 : vector<16x32xf32>, vector<16x32xf32> -> vector<16x64xf32>
    %31 = vector.extract_strided_slice %26 {offsets = [1, 0, 0], sizes = [1, 16, 32], strides = [1, 1, 1]} : vector<2x16x32xbf16> to vector<1x16x32xbf16>
    %32 = vector.shape_cast %31 : vector<1x16x32xbf16> to vector<16x32xbf16>
    %33 = arith.extf %32 : vector<16x32xbf16> to vector<16x32xf32>
    %34 = tpu.concatenate %33, %33 in 1 : vector<16x32xf32>, vector<16x32xf32> -> vector<16x64xf32>
    %35 = arith.mulf %21, %21 : vector<16x64xf32>
    %36 = arith.mulf %22, %22 : vector<16x64xf32>
    %37 = arith.subf %35, %36 : vector<16x64xf32>
    %cst_18 = arith.constant 2.000000e-01 : f32
    %38 = vector.broadcast %cst_18 : f32 to vector<16x64xf32>
    %39 = arith.mulf %37, %38 : vector<16x64xf32>
    %cst_19 = arith.constant 2.000000e+00 : f32
    %40 = vector.broadcast %cst_19 : f32 to vector<16x64xf32>
    %41 = arith.mulf %40, %21 : vector<16x64xf32>
    %42 = arith.mulf %41, %22 : vector<16x64xf32>
    %cst_20 = arith.constant 2.000000e-01 : f32
    %43 = vector.broadcast %cst_20 : f32 to vector<16x64xf32>
    %44 = arith.mulf %42, %43 : vector<16x64xf32>
    %45 = arith.mulf %39, %30 : vector<16x64xf32>
    %46 = arith.mulf %44, %34 : vector<16x64xf32>
    %47 = arith.subf %45, %46 : vector<16x64xf32>
    %48 = arith.mulf %39, %34 : vector<16x64xf32>
    %49 = arith.mulf %44, %30 : vector<16x64xf32>
    %50 = arith.addf %48, %49 : vector<16x64xf32>
    %c0_21 = arith.constant 0 : index
    %c0_22 = arith.constant 0 : index
    %c0_23 = arith.constant 0 : index
    %c0_24 = arith.constant 0 : index
    %51 = vector.load %arg9[%c0_21, %c0_22, %c0_23, %c0_24] : memref<1x2x16x32xbf16, #tpu.memory_space<vmem>>, vector<1x2x16x32xbf16>
    %52 = vector.shape_cast %51 : vector<1x2x16x32xbf16> to vector<2x16x32xbf16>
    %53 = vector.extract_strided_slice %52 {offsets = [0, 0, 0], sizes = [1, 16, 32], strides = [1, 1, 1]} : vector<2x16x32xbf16> to vector<1x16x32xbf16>
    %54 = vector.shape_cast %53 : vector<1x16x32xbf16> to vector<16x32xbf16>
    %55 = arith.extf %54 : vector<16x32xbf16> to vector<16x32xf32>
    %56 = tpu.concatenate %55, %55 in 1 : vector<16x32xf32>, vector<16x32xf32> -> vector<16x64xf32>
    %57 = vector.extract_strided_slice %52 {offsets = [1, 0, 0], sizes = [1, 16, 32], strides = [1, 1, 1]} : vector<2x16x32xbf16> to vector<1x16x32xbf16>
    %58 = vector.shape_cast %57 : vector<1x16x32xbf16> to vector<16x32xbf16>
    %59 = arith.extf %58 : vector<16x32xbf16> to vector<16x32xf32>
    %60 = tpu.concatenate %59, %59 in 1 : vector<16x32xf32>, vector<16x32xf32> -> vector<16x64xf32>
    %61 = arith.mulf %23, %23 : vector<16x64xf32>
    %62 = arith.mulf %24, %24 : vector<16x64xf32>
    %63 = arith.subf %61, %62 : vector<16x64xf32>
    %cst_25 = arith.constant 0.111111112 : f32
    %64 = vector.broadcast %cst_25 : f32 to vector<16x64xf32>
    %65 = arith.mulf %63, %64 : vector<16x64xf32>
    %cst_26 = arith.constant 2.000000e+00 : f32
    %66 = vector.broadcast %cst_26 : f32 to vector<16x64xf32>
    %67 = arith.mulf %66, %23 : vector<16x64xf32>
    %68 = arith.mulf %67, %24 : vector<16x64xf32>
    %cst_27 = arith.constant 0.111111112 : f32
    %69 = vector.broadcast %cst_27 : f32 to vector<16x64xf32>
    %70 = arith.mulf %68, %69 : vector<16x64xf32>
    %71 = arith.mulf %65, %56 : vector<16x64xf32>
    %72 = arith.mulf %70, %60 : vector<16x64xf32>
    %73 = arith.subf %71, %72 : vector<16x64xf32>
    %74 = arith.mulf %65, %60 : vector<16x64xf32>
    %75 = arith.mulf %70, %56 : vector<16x64xf32>
    %76 = arith.addf %74, %75 : vector<16x64xf32>
    %c0_28 = arith.constant 0 : index
    %c0_29 = arith.constant 0 : index
    %c0_30 = arith.constant 0 : index
    %c0_31 = arith.constant 0 : index
    %77 = vector.load %arg10[%c0_28, %c0_29, %c0_30, %c0_31] : memref<1x2x16x32xbf16, #tpu.memory_space<vmem>>, vector<1x2x16x32xbf16>
    %78 = vector.shape_cast %77 : vector<1x2x16x32xbf16> to vector<2x16x32xbf16>
    %79 = vector.extract_strided_slice %78 {offsets = [0, 0, 0], sizes = [1, 16, 32], strides = [1, 1, 1]} : vector<2x16x32xbf16> to vector<1x16x32xbf16>
    %80 = vector.shape_cast %79 : vector<1x16x32xbf16> to vector<16x32xbf16>
    %81 = arith.extf %80 : vector<16x32xbf16> to vector<16x32xf32>
    %82 = tpu.concatenate %81, %81 in 1 : vector<16x32xf32>, vector<16x32xf32> -> vector<16x64xf32>
    %83 = arith.mulf %73, %82 : vector<16x64xf32>
    %84 = vector.extract_strided_slice %78 {offsets = [1, 0, 0], sizes = [1, 16, 32], strides = [1, 1, 1]} : vector<2x16x32xbf16> to vector<1x16x32xbf16>
    %85 = vector.shape_cast %84 : vector<1x16x32xbf16> to vector<16x32xbf16>
    %86 = arith.extf %85 : vector<16x32xbf16> to vector<16x32xf32>
    %87 = tpu.concatenate %86, %86 in 1 : vector<16x32xf32>, vector<16x32xf32> -> vector<16x64xf32>
    %88 = arith.mulf %76, %87 : vector<16x64xf32>
    %89 = arith.subf %83, %88 : vector<16x64xf32>
    %cst_32 = arith.constant dense<0.000000e+00> : vector<64xf32>
    %90 = vector.multi_reduction <add>, %89, %cst_32 [0] : vector<16x64xf32> to vector<64xf32>
    %91 = vector.shape_cast %90 : vector<64xf32> to vector<1x64xf32>
    %cst_33 = arith.constant 0.111111112 : f32
    %92 = vector.broadcast %cst_33 : f32 to vector<1x64xf32>
    %93 = arith.mulf %91, %92 : vector<1x64xf32>
    %94 = vector.extract_strided_slice %93 {offsets = [0, 0], sizes = [1, 32], strides = [1, 1]} : vector<1x64xf32> to vector<1x32xf32>
    %95 = vector.extract_strided_slice %93 {offsets = [0, 32], sizes = [1, 32], strides = [1, 1]} : vector<1x64xf32> to vector<1x32xf32>
    %96 = tpu.concatenate %94, %95 in 0 : vector<1x32xf32>, vector<1x32xf32> -> vector<2x32xf32>
    %c0_34 = arith.constant 0 : index
    %c0_35 = arith.constant 0 : index
    %c0_36 = arith.constant 0 : index
    %c0_37 = arith.constant 0 : index
    %97 = vector.load %arg12[%c0_34, %c0_35, %c0_36, %c0_37] : memref<1x6x32x32xbf16, #tpu.memory_space<vmem>>, vector<1x1x32x32xbf16>
    %98 = vector.shape_cast %97 : vector<1x1x32x32xbf16> to vector<32x32xbf16>
    %99 = arith.truncf %96 : vector<2x32xf32> to vector<2x32xbf16>
    %cst_38 = arith.constant dense<0.000000e+00> : vector<2x32xf32>
    %100 = tpu.matmul %99, %98, %cst_38 {dimension_numbers = #tpu.dot_dimension_numbers<[1], [0], [0], [1], [0, 0, 1, 1], [], []>} : vector<2x32xbf16>, vector<32x32xbf16>, vector<2x32xf32> -> vector<2x32xf32>
    %101 = vector.extract_strided_slice %6 {offsets = [0, 0], sizes = [1, 32], strides = [1, 1]} : vector<16x32xf32> to vector<1x32xf32>
    %102 = vector.broadcast %101 : vector<1x32xf32> to vector<2x32xf32>
    %103 = arith.addf %100, %102 : vector<2x32xf32>
    %104 = vector.extract_strided_slice %103 {offsets = [0, 0], sizes = [1, 32], strides = [1, 1]} : vector<2x32xf32> to vector<1x32xf32>
    %105 = vector.extract_strided_slice %103 {offsets = [1, 0], sizes = [1, 32], strides = [1, 1]} : vector<2x32xf32> to vector<1x32xf32>
    %106 = tpu.concatenate %104, %105 in 1 : vector<1x32xf32>, vector<1x32xf32> -> vector<1x64xf32>
    %107 = vector.broadcast %106 : vector<1x64xf32> to vector<16x64xf32>
    %108 = arith.mulf %47, %107 : vector<16x64xf32>
    %109 = vector.broadcast %106 : vector<1x64xf32> to vector<16x64xf32>
    %110 = arith.mulf %50, %109 : vector<16x64xf32>
    %c0_39 = arith.constant 0 : index
    %c0_40 = arith.constant 0 : index
    %c0_41 = arith.constant 0 : index
    %c0_42 = arith.constant 0 : index
    %111 = vector.load %arg11[%c0_39, %c0_40, %c0_41, %c0_42] : memref<1x2x16x32xbf16, #tpu.memory_space<vmem>>, vector<1x2x16x32xbf16>
    %112 = vector.shape_cast %111 : vector<1x2x16x32xbf16> to vector<2x16x32xbf16>
    %113 = vector.extract_strided_slice %112 {offsets = [0, 0, 0], sizes = [1, 16, 32], strides = [1, 1, 1]} : vector<2x16x32xbf16> to vector<1x16x32xbf16>
    %114 = vector.shape_cast %113 : vector<1x16x32xbf16> to vector<16x32xbf16>
    %115 = arith.extf %114 : vector<16x32xbf16> to vector<16x32xf32>
    %116 = tpu.concatenate %115, %115 in 1 : vector<16x32xf32>, vector<16x32xf32> -> vector<16x64xf32>
    %117 = arith.mulf %108, %116 : vector<16x64xf32>
    %118 = vector.extract_strided_slice %112 {offsets = [1, 0, 0], sizes = [1, 16, 32], strides = [1, 1, 1]} : vector<2x16x32xbf16> to vector<1x16x32xbf16>
    %119 = vector.shape_cast %118 : vector<1x16x32xbf16> to vector<16x32xbf16>
    %120 = arith.extf %119 : vector<16x32xbf16> to vector<16x32xf32>
    %121 = tpu.concatenate %120, %120 in 1 : vector<16x32xf32>, vector<16x32xf32> -> vector<16x64xf32>
    %122 = arith.mulf %110, %121 : vector<16x64xf32>
    %123 = arith.subf %117, %122 : vector<16x64xf32>
    %cst_43 = arith.constant dense<0.000000e+00> : vector<64xf32>
    %124 = vector.multi_reduction <add>, %123, %cst_43 [0] : vector<16x64xf32> to vector<64xf32>
    %125 = vector.shape_cast %124 : vector<64xf32> to vector<1x64xf32>
    %cst_44 = arith.constant 2.000000e-01 : f32
    %126 = vector.broadcast %cst_44 : f32 to vector<1x64xf32>
    %127 = arith.mulf %125, %126 : vector<1x64xf32>
    %128 = vector.extract_strided_slice %127 {offsets = [0, 0], sizes = [1, 32], strides = [1, 1]} : vector<1x64xf32> to vector<1x32xf32>
    %129 = vector.extract_strided_slice %127 {offsets = [0, 32], sizes = [1, 32], strides = [1, 1]} : vector<1x64xf32> to vector<1x32xf32>
    %130 = tpu.concatenate %128, %129 in 0 : vector<1x32xf32>, vector<1x32xf32> -> vector<2x32xf32>
    %c0_45 = arith.constant 0 : index
    %c1 = arith.constant 1 : index
    %c0_46 = arith.constant 0 : index
    %c0_47 = arith.constant 0 : index
    %131 = vector.load %arg12[%c0_45, %c1, %c0_46, %c0_47] : memref<1x6x32x32xbf16, #tpu.memory_space<vmem>>, vector<1x1x32x32xbf16>
    %132 = vector.shape_cast %131 : vector<1x1x32x32xbf16> to vector<32x32xbf16>
    %133 = arith.truncf %130 : vector<2x32xf32> to vector<2x32xbf16>
    %cst_48 = arith.constant dense<0.000000e+00> : vector<2x32xf32>
    %134 = tpu.matmul %133, %132, %cst_48 {dimension_numbers = #tpu.dot_dimension_numbers<[1], [0], [0], [1], [0, 0, 1, 1], [], []>} : vector<2x32xbf16>, vector<32x32xbf16>, vector<2x32xf32> -> vector<2x32xf32>
    %135 = vector.extract_strided_slice %6 {offsets = [1, 0], sizes = [1, 32], strides = [1, 1]} : vector<16x32xf32> to vector<1x32xf32>
    %136 = vector.broadcast %135 : vector<1x32xf32> to vector<2x32xf32>
    %137 = arith.addf %134, %136 : vector<2x32xf32>
    %138 = vector.extract_strided_slice %137 {offsets = [0, 0], sizes = [1, 32], strides = [1, 1]} : vector<2x32xf32> to vector<1x32xf32>
    %139 = vector.extract_strided_slice %137 {offsets = [1, 0], sizes = [1, 32], strides = [1, 1]} : vector<2x32xf32> to vector<1x32xf32>
    %140 = tpu.concatenate %138, %139 in 1 : vector<1x32xf32>, vector<1x32xf32> -> vector<1x64xf32>
    %141 = vector.broadcast %140 : vector<1x64xf32> to vector<16x64xf32>
    %142 = arith.mulf %73, %141 : vector<16x64xf32>
    %143 = vector.broadcast %140 : vector<1x64xf32> to vector<16x64xf32>
    %144 = arith.mulf %76, %143 : vector<16x64xf32>
    %c0_49 = arith.constant 0 : index
    %c0_50 = arith.constant 0 : index
    %145 = vector.load %arg5[%c0_49, %c0_50] : memref<8x32xbf16, #tpu.memory_space<vmem>>, vector<8x32xbf16>
    %146 = tpu.concatenate %108, %110 in 0 : vector<16x64xf32>, vector<16x64xf32> -> vector<32x64xf32>
    %147 = arith.truncf %146 : vector<32x64xf32> to vector<32x64xbf16>
    %cst_51 = arith.constant dense<0.000000e+00> : vector<8x64xf32>
    %148 = tpu.matmul %145, %147, %cst_51 {dimension_numbers = #tpu.dot_dimension_numbers<[1], [0], [0], [1], [0, 0, 1, 1], [], []>} : vector<8x32xbf16>, vector<32x64xbf16>, vector<8x64xf32> -> vector<8x64xf32>
    %149 = arith.addf %148, %11 : vector<8x64xf32>
    %c0_52 = arith.constant 0 : index
    %c0_53 = arith.constant 0 : index
    %150 = vector.load %arg7[%c0_52, %c0_53] : memref<16x32xbf16, #tpu.memory_space<vmem>>, vector<16x32xbf16>
    %151 = tpu.concatenate %142, %144 in 0 : vector<16x64xf32>, vector<16x64xf32> -> vector<32x64xf32>
    %152 = arith.truncf %151 : vector<32x64xf32> to vector<32x64xbf16>
    %cst_54 = arith.constant dense<0.000000e+00> : vector<16x64xf32>
    %153 = tpu.matmul %150, %152, %cst_54 {dimension_numbers = #tpu.dot_dimension_numbers<[1], [0], [0], [1], [0, 0, 1, 1], [], []>} : vector<16x32xbf16>, vector<32x64xbf16>, vector<16x64xf32> -> vector<16x64xf32>
    %154 = arith.addf %153, %16 : vector<16x64xf32>
    %155 = vector.extract_strided_slice %149 {offsets = [0, 0], sizes = [8, 32], strides = [1, 1]} : vector<8x64xf32> to vector<8x32xf32>
    %156 = vector.extract_strided_slice %149 {offsets = [0, 32], sizes = [8, 32], strides = [1, 1]} : vector<8x64xf32> to vector<8x32xf32>
    %157 = tpu.concatenate %155, %156 in 0 : vector<8x32xf32>, vector<8x32xf32> -> vector<16x32xf32>
    %158 = vector.extract_strided_slice %154 {offsets = [0, 0], sizes = [16, 32], strides = [1, 1]} : vector<16x64xf32> to vector<16x32xf32>
    %159 = vector.extract_strided_slice %154 {offsets = [0, 32], sizes = [16, 32], strides = [1, 1]} : vector<16x64xf32> to vector<16x32xf32>
    %160 = tpu.concatenate %158, %159 in 0 : vector<16x32xf32>, vector<16x32xf32> -> vector<32x32xf32>
    %161 = vector.extract_strided_slice %6 {offsets = [6, 0], sizes = [1, 32], strides = [1, 1]} : vector<16x32xf32> to vector<1x32xf32>
    %162 = vector.extract_strided_slice %6 {offsets = [7, 0], sizes = [1, 32], strides = [1, 1]} : vector<16x32xf32> to vector<1x32xf32>
    %cst_55 = arith.constant dense<0.000000e+00> : vector<16xf32>
    %163 = vector.multi_reduction <add>, %157, %cst_55 [1] : vector<16x32xf32> to vector<16xf32>
    %164 = vector.shape_cast %163 : vector<16xf32> to vector<16x1xf32>
    %cst_56 = arith.constant 3.200000e+01 : f32
    %165 = vector.broadcast %cst_56 : f32 to vector<16x1xf32>
    %166 = arith.divf %164, %165 : vector<16x1xf32>
    %167 = vector.broadcast %166 : vector<16x1xf32> to vector<16x32xf32>
    %168 = arith.subf %157, %167 : vector<16x32xf32>
    %169 = arith.mulf %168, %168 : vector<16x32xf32>
    %cst_57 = arith.constant dense<0.000000e+00> : vector<16xf32>
    %170 = vector.multi_reduction <add>, %169, %cst_57 [1] : vector<16x32xf32> to vector<16xf32>
    %171 = vector.shape_cast %170 : vector<16xf32> to vector<16x1xf32>
    %cst_58 = arith.constant 3.200000e+01 : f32
    %172 = vector.broadcast %cst_58 : f32 to vector<16x1xf32>
    %173 = arith.divf %171, %172 : vector<16x1xf32>
    %cst_59 = arith.constant 9.99999974E-6 : f32
    %174 = vector.broadcast %cst_59 : f32 to vector<16x1xf32>
    %175 = arith.addf %173, %174 : vector<16x1xf32>
    %176 = math.rsqrt %175 : vector<16x1xf32>
    %177 = vector.broadcast %176 : vector<16x1xf32> to vector<16x32xf32>
    %178 = arith.mulf %168, %177 : vector<16x32xf32>
    %179 = vector.broadcast %161 : vector<1x32xf32> to vector<16x32xf32>
    %180 = arith.mulf %178, %179 : vector<16x32xf32>
    %181 = vector.broadcast %162 : vector<1x32xf32> to vector<16x32xf32>
    %182 = arith.addf %180, %181 : vector<16x32xf32>
    %c0_60 = arith.constant 0 : index
    %c2 = arith.constant 2 : index
    %c0_61 = arith.constant 0 : index
    %c0_62 = arith.constant 0 : index
    %183 = vector.load %arg12[%c0_60, %c2, %c0_61, %c0_62] : memref<1x6x32x32xbf16, #tpu.memory_space<vmem>>, vector<1x1x32x32xbf16>
    %184 = vector.shape_cast %183 : vector<1x1x32x32xbf16> to vector<32x32xbf16>
    %185 = arith.truncf %182 : vector<16x32xf32> to vector<16x32xbf16>
    %cst_63 = arith.constant dense<0.000000e+00> : vector<16x32xf32>
    %186 = tpu.matmul %185, %184, %cst_63 {dimension_numbers = #tpu.dot_dimension_numbers<[1], [0], [0], [1], [0, 0, 1, 1], [], []>} : vector<16x32xbf16>, vector<32x32xbf16>, vector<16x32xf32> -> vector<16x32xf32>
    %187 = vector.extract_strided_slice %6 {offsets = [2, 0], sizes = [1, 32], strides = [1, 1]} : vector<16x32xf32> to vector<1x32xf32>
    %188 = vector.broadcast %187 : vector<1x32xf32> to vector<16x32xf32>
    %189 = arith.addf %186, %188 : vector<16x32xf32>
    %cst_64 = arith.constant 5.000000e-01 : f32
    %190 = vector.broadcast %cst_64 : f32 to vector<16x32xf32>
    %191 = arith.mulf %190, %189 : vector<16x32xf32>
    %cst_65 = arith.constant 0.707106769 : f32
    %192 = vector.broadcast %cst_65 : f32 to vector<16x32xf32>
    %193 = arith.mulf %189, %192 : vector<16x32xf32>
    %194 = math.erf %193 : vector<16x32xf32>
    %cst_66 = arith.constant 1.000000e+00 : f32
    %195 = vector.broadcast %cst_66 : f32 to vector<16x32xf32>
    %196 = arith.addf %195, %194 : vector<16x32xf32>
    %197 = arith.mulf %191, %196 : vector<16x32xf32>
    %c0_67 = arith.constant 0 : index
    %c3 = arith.constant 3 : index
    %c0_68 = arith.constant 0 : index
    %c0_69 = arith.constant 0 : index
    %198 = vector.load %arg12[%c0_67, %c3, %c0_68, %c0_69] : memref<1x6x32x32xbf16, #tpu.memory_space<vmem>>, vector<1x1x32x32xbf16>
    %199 = vector.shape_cast %198 : vector<1x1x32x32xbf16> to vector<32x32xbf16>
    %200 = arith.truncf %197 : vector<16x32xf32> to vector<16x32xbf16>
    %cst_70 = arith.constant dense<0.000000e+00> : vector<16x32xf32>
    %201 = tpu.matmul %200, %199, %cst_70 {dimension_numbers = #tpu.dot_dimension_numbers<[1], [0], [0], [1], [0, 0, 1, 1], [], []>} : vector<16x32xbf16>, vector<32x32xbf16>, vector<16x32xf32> -> vector<16x32xf32>
    %202 = vector.extract_strided_slice %6 {offsets = [3, 0], sizes = [1, 32], strides = [1, 1]} : vector<16x32xf32> to vector<1x32xf32>
    %203 = vector.broadcast %202 : vector<1x32xf32> to vector<16x32xf32>
    %204 = arith.addf %201, %203 : vector<16x32xf32>
    %205 = arith.addf %204, %182 : vector<16x32xf32>
    %206 = vector.extract_strided_slice %6 {offsets = [8, 0], sizes = [1, 32], strides = [1, 1]} : vector<16x32xf32> to vector<1x32xf32>
    %207 = vector.extract_strided_slice %6 {offsets = [9, 0], sizes = [1, 32], strides = [1, 1]} : vector<16x32xf32> to vector<1x32xf32>
    %cst_71 = arith.constant dense<0.000000e+00> : vector<16xf32>
    %208 = vector.multi_reduction <add>, %205, %cst_71 [1] : vector<16x32xf32> to vector<16xf32>
    %209 = vector.shape_cast %208 : vector<16xf32> to vector<16x1xf32>
    %cst_72 = arith.constant 3.200000e+01 : f32
    %210 = vector.broadcast %cst_72 : f32 to vector<16x1xf32>
    %211 = arith.divf %209, %210 : vector<16x1xf32>
    %212 = vector.broadcast %211 : vector<16x1xf32> to vector<16x32xf32>
    %213 = arith.subf %205, %212 : vector<16x32xf32>
    %214 = arith.mulf %213, %213 : vector<16x32xf32>
    %cst_73 = arith.constant dense<0.000000e+00> : vector<16xf32>
    %215 = vector.multi_reduction <add>, %214, %cst_73 [1] : vector<16x32xf32> to vector<16xf32>
    %216 = vector.shape_cast %215 : vector<16xf32> to vector<16x1xf32>
    %cst_74 = arith.constant 3.200000e+01 : f32
    %217 = vector.broadcast %cst_74 : f32 to vector<16x1xf32>
    %218 = arith.divf %216, %217 : vector<16x1xf32>
    %cst_75 = arith.constant 9.99999974E-6 : f32
    %219 = vector.broadcast %cst_75 : f32 to vector<16x1xf32>
    %220 = arith.addf %218, %219 : vector<16x1xf32>
    %221 = math.rsqrt %220 : vector<16x1xf32>
    %222 = vector.broadcast %221 : vector<16x1xf32> to vector<16x32xf32>
    %223 = arith.mulf %213, %222 : vector<16x32xf32>
    %224 = vector.broadcast %206 : vector<1x32xf32> to vector<16x32xf32>
    %225 = arith.mulf %223, %224 : vector<16x32xf32>
    %226 = vector.broadcast %207 : vector<1x32xf32> to vector<16x32xf32>
    %227 = arith.addf %225, %226 : vector<16x32xf32>
    %228 = vector.extract_strided_slice %6 {offsets = [10, 0], sizes = [1, 32], strides = [1, 1]} : vector<16x32xf32> to vector<1x32xf32>
    %229 = vector.extract_strided_slice %6 {offsets = [11, 0], sizes = [1, 32], strides = [1, 1]} : vector<16x32xf32> to vector<1x32xf32>
    %cst_76 = arith.constant dense<0.000000e+00> : vector<32xf32>
    %230 = vector.multi_reduction <add>, %160, %cst_76 [1] : vector<32x32xf32> to vector<32xf32>
    %231 = vector.shape_cast %230 : vector<32xf32> to vector<32x1xf32>
    %cst_77 = arith.constant 3.200000e+01 : f32
    %232 = vector.broadcast %cst_77 : f32 to vector<32x1xf32>
    %233 = arith.divf %231, %232 : vector<32x1xf32>
    %234 = vector.broadcast %233 : vector<32x1xf32> to vector<32x32xf32>
    %235 = arith.subf %160, %234 : vector<32x32xf32>
    %236 = arith.mulf %235, %235 : vector<32x32xf32>
    %cst_78 = arith.constant dense<0.000000e+00> : vector<32xf32>
    %237 = vector.multi_reduction <add>, %236, %cst_78 [1] : vector<32x32xf32> to vector<32xf32>
    %238 = vector.shape_cast %237 : vector<32xf32> to vector<32x1xf32>
    %cst_79 = arith.constant 3.200000e+01 : f32
    %239 = vector.broadcast %cst_79 : f32 to vector<32x1xf32>
    %240 = arith.divf %238, %239 : vector<32x1xf32>
    %cst_80 = arith.constant 9.99999974E-6 : f32
    %241 = vector.broadcast %cst_80 : f32 to vector<32x1xf32>
    %242 = arith.addf %240, %241 : vector<32x1xf32>
    %243 = math.rsqrt %242 : vector<32x1xf32>
    %244 = vector.broadcast %243 : vector<32x1xf32> to vector<32x32xf32>
    %245 = arith.mulf %235, %244 : vector<32x32xf32>
    %246 = vector.broadcast %228 : vector<1x32xf32> to vector<32x32xf32>
    %247 = arith.mulf %245, %246 : vector<32x32xf32>
    %248 = vector.broadcast %229 : vector<1x32xf32> to vector<32x32xf32>
    %249 = arith.addf %247, %248 : vector<32x32xf32>
    %c0_81 = arith.constant 0 : index
    %c4 = arith.constant 4 : index
    %c0_82 = arith.constant 0 : index
    %c0_83 = arith.constant 0 : index
    %250 = vector.load %arg12[%c0_81, %c4, %c0_82, %c0_83] : memref<1x6x32x32xbf16, #tpu.memory_space<vmem>>, vector<1x1x32x32xbf16>
    %251 = vector.shape_cast %250 : vector<1x1x32x32xbf16> to vector<32x32xbf16>
    %252 = arith.truncf %249 : vector<32x32xf32> to vector<32x32xbf16>
    %cst_84 = arith.constant dense<0.000000e+00> : vector<32x32xf32>
    %253 = tpu.matmul %252, %251, %cst_84 {dimension_numbers = #tpu.dot_dimension_numbers<[1], [0], [0], [1], [0, 0, 1, 1], [], []>} : vector<32x32xbf16>, vector<32x32xbf16>, vector<32x32xf32> -> vector<32x32xf32>
    %254 = vector.extract_strided_slice %6 {offsets = [4, 0], sizes = [1, 32], strides = [1, 1]} : vector<16x32xf32> to vector<1x32xf32>
    %255 = vector.broadcast %254 : vector<1x32xf32> to vector<32x32xf32>
    %256 = arith.addf %253, %255 : vector<32x32xf32>
    %cst_85 = arith.constant 5.000000e-01 : f32
    %257 = vector.broadcast %cst_85 : f32 to vector<32x32xf32>
    %258 = arith.mulf %257, %256 : vector<32x32xf32>
    %cst_86 = arith.constant 0.707106769 : f32
    %259 = vector.broadcast %cst_86 : f32 to vector<32x32xf32>
    %260 = arith.mulf %256, %259 : vector<32x32xf32>
    %261 = math.erf %260 : vector<32x32xf32>
    %cst_87 = arith.constant 1.000000e+00 : f32
    %262 = vector.broadcast %cst_87 : f32 to vector<32x32xf32>
    %263 = arith.addf %262, %261 : vector<32x32xf32>
    %264 = arith.mulf %258, %263 : vector<32x32xf32>
    %c0_88 = arith.constant 0 : index
    %c5 = arith.constant 5 : index
    %c0_89 = arith.constant 0 : index
    %c0_90 = arith.constant 0 : index
    %265 = vector.load %arg12[%c0_88, %c5, %c0_89, %c0_90] : memref<1x6x32x32xbf16, #tpu.memory_space<vmem>>, vector<1x1x32x32xbf16>
    %266 = vector.shape_cast %265 : vector<1x1x32x32xbf16> to vector<32x32xbf16>
    %267 = arith.truncf %264 : vector<32x32xf32> to vector<32x32xbf16>
    %cst_91 = arith.constant dense<0.000000e+00> : vector<32x32xf32>
    %268 = tpu.matmul %267, %266, %cst_91 {dimension_numbers = #tpu.dot_dimension_numbers<[1], [0], [0], [1], [0, 0, 1, 1], [], []>} : vector<32x32xbf16>, vector<32x32xbf16>, vector<32x32xf32> -> vector<32x32xf32>
    %269 = vector.extract_strided_slice %6 {offsets = [5, 0], sizes = [1, 32], strides = [1, 1]} : vector<16x32xf32> to vector<1x32xf32>
    %270 = vector.broadcast %269 : vector<1x32xf32> to vector<32x32xf32>
    %271 = arith.addf %268, %270 : vector<32x32xf32>
    %272 = arith.addf %271, %249 : vector<32x32xf32>
    %273 = vector.extract_strided_slice %6 {offsets = [12, 0], sizes = [1, 32], strides = [1, 1]} : vector<16x32xf32> to vector<1x32xf32>
    %274 = vector.extract_strided_slice %6 {offsets = [13, 0], sizes = [1, 32], strides = [1, 1]} : vector<16x32xf32> to vector<1x32xf32>
    %cst_92 = arith.constant dense<0.000000e+00> : vector<32xf32>
    %275 = vector.multi_reduction <add>, %272, %cst_92 [1] : vector<32x32xf32> to vector<32xf32>
    %276 = vector.shape_cast %275 : vector<32xf32> to vector<32x1xf32>
    %cst_93 = arith.constant 3.200000e+01 : f32
    %277 = vector.broadcast %cst_93 : f32 to vector<32x1xf32>
    %278 = arith.divf %276, %277 : vector<32x1xf32>
    %279 = vector.broadcast %278 : vector<32x1xf32> to vector<32x32xf32>
    %280 = arith.subf %272, %279 : vector<32x32xf32>
    %281 = arith.mulf %280, %280 : vector<32x32xf32>
    %cst_94 = arith.constant dense<0.000000e+00> : vector<32xf32>
    %282 = vector.multi_reduction <add>, %281, %cst_94 [1] : vector<32x32xf32> to vector<32xf32>
    %283 = vector.shape_cast %282 : vector<32xf32> to vector<32x1xf32>
    %cst_95 = arith.constant 3.200000e+01 : f32
    %284 = vector.broadcast %cst_95 : f32 to vector<32x1xf32>
    %285 = arith.divf %283, %284 : vector<32x1xf32>
    %cst_96 = arith.constant 9.99999974E-6 : f32
    %286 = vector.broadcast %cst_96 : f32 to vector<32x1xf32>
    %287 = arith.addf %285, %286 : vector<32x1xf32>
    %288 = math.rsqrt %287 : vector<32x1xf32>
    %289 = vector.broadcast %288 : vector<32x1xf32> to vector<32x32xf32>
    %290 = arith.mulf %280, %289 : vector<32x32xf32>
    %291 = vector.broadcast %273 : vector<1x32xf32> to vector<32x32xf32>
    %292 = arith.mulf %290, %291 : vector<32x32xf32>
    %293 = vector.broadcast %274 : vector<1x32xf32> to vector<32x32xf32>
    %294 = arith.addf %292, %293 : vector<32x32xf32>
    %295 = vector.shape_cast %227 : vector<16x32xf32> to vector<2x8x32xf32>
    %c0_97 = arith.constant 0 : index
    %c0_98 = arith.constant 0 : index
    %c0_99 = arith.constant 0 : index
    %296 = vector.load %arg14[%c0_97, %c0_98, %c0_99] : memref<2x8x32xf32, #tpu.memory_space<vmem>>, vector<2x8x32xf32>
    tpu.vector_store %arg14[%c0_97, %c0_98, %c0_99], %295 {strides = array<i32>} : memref<2x8x32xf32, #tpu.memory_space<vmem>>, vector<2x8x32xf32>,
    %297 = vector.shape_cast %294 : vector<32x32xf32> to vector<2x16x32xf32>
    %c0_100 = arith.constant 0 : index
    %c0_101 = arith.constant 0 : index
    %c0_102 = arith.constant 0 : index
    %298 = vector.load %arg15[%c0_100, %c0_101, %c0_102] : memref<2x16x32xf32, #tpu.memory_space<vmem>>, vector<2x16x32xf32>
    tpu.vector_store %arg15[%c0_100, %c0_101, %c0_102], %297 {strides = array<i32>} : memref<2x16x32xf32, #tpu.memory_space<vmem>>, vector<2x16x32xf32>,
    return
  }
  func.func @transform_0(%arg0: i32, %arg1: i32) -> (i32, i32, i32) {
    %c0_i32 = arith.constant 0 : i32
    %c0_i32_0 = arith.constant 0 : i32
    %c0_i32_1 = arith.constant 0 : i32
    return %arg0, %c0_i32, %c0_i32_0 : i32, i32, i32
  }
  func.func @transform_1(%arg0: i32, %arg1: i32) -> (i32, i32, i32) {
    %c0_i32 = arith.constant 0 : i32
    %c0_i32_0 = arith.constant 0 : i32
    %c0_i32_1 = arith.constant 0 : i32
    return %arg0, %c0_i32, %c0_i32_0 : i32, i32, i32
  }
  func.func @transform_2(%arg0: i32, %arg1: i32) -> (i32, i32) {
    %c0_i32 = arith.constant 0 : i32
    %c0_i32_0 = arith.constant 0 : i32
    %c0_i32_1 = arith.constant 0 : i32
    return %c0_i32, %c0_i32_0 : i32, i32
  }
  func.func @transform_3(%arg0: i32, %arg1: i32) -> (i32, i32) {
    %c0_i32 = arith.constant 0 : i32
    %c0_i32_0 = arith.constant 0 : i32
    %c0_i32_1 = arith.constant 0 : i32
    return %c0_i32, %c0_i32_0 : i32, i32
  }
  func.func @transform_4(%arg0: i32, %arg1: i32) -> (i32, i32) {
    %c0_i32 = arith.constant 0 : i32
    %c0_i32_0 = arith.constant 0 : i32
    %c0_i32_1 = arith.constant 0 : i32
    return %c0_i32, %c0_i32_0 : i32, i32
  }
  func.func @transform_5(%arg0: i32, %arg1: i32) -> (i32, i32) {
    %c0_i32 = arith.constant 0 : i32
    %c0_i32_0 = arith.constant 0 : i32
    %c0_i32_1 = arith.constant 0 : i32
    return %c0_i32, %c0_i32_0 : i32, i32
  }
  func.func @transform_6(%arg0: i32, %arg1: i32) -> (i32, i32, i32, i32) {
    %c0_i32 = arith.constant 0 : i32
    %c0_i32_0 = arith.constant 0 : i32
    %c0_i32_1 = arith.constant 0 : i32
    %c0_i32_2 = arith.constant 0 : i32
    return %arg1, %c0_i32, %c0_i32_0, %c0_i32_1 : i32, i32, i32, i32
  }
  func.func @transform_7(%arg0: i32, %arg1: i32) -> (i32, i32, i32, i32) {
    %c0_i32 = arith.constant 0 : i32
    %c0_i32_0 = arith.constant 0 : i32
    %c0_i32_1 = arith.constant 0 : i32
    %c0_i32_2 = arith.constant 0 : i32
    return %arg1, %c0_i32, %c0_i32_0, %c0_i32_1 : i32, i32, i32, i32
  }
  func.func @transform_8(%arg0: i32, %arg1: i32) -> (i32, i32, i32, i32) {
    %c0_i32 = arith.constant 0 : i32
    %c0_i32_0 = arith.constant 0 : i32
    %c0_i32_1 = arith.constant 0 : i32
    %c0_i32_2 = arith.constant 0 : i32
    return %arg1, %c0_i32, %c0_i32_0, %c0_i32_1 : i32, i32, i32, i32
  }
  func.func @transform_9(%arg0: i32, %arg1: i32) -> (i32, i32, i32, i32) {
    %c0_i32 = arith.constant 0 : i32
    %c0_i32_0 = arith.constant 0 : i32
    %c0_i32_1 = arith.constant 0 : i32
    %c0_i32_2 = arith.constant 0 : i32
    return %arg1, %c0_i32, %c0_i32_0, %c0_i32_1 : i32, i32, i32, i32
  }
  func.func @transform_10(%arg0: i32, %arg1: i32) -> (i32, i32, i32, i32) {
    %c0_i32 = arith.constant 0 : i32
    %c0_i32_0 = arith.constant 0 : i32
    %c0_i32_1 = arith.constant 0 : i32
    %c0_i32_2 = arith.constant 0 : i32
    return %arg1, %c0_i32, %c0_i32_0, %c0_i32_1 : i32, i32, i32, i32
  }
  func.func @transform_11(%arg0: i32, %arg1: i32) -> (i32, i32, i32) {
    %c0_i32 = arith.constant 0 : i32
    %c0_i32_0 = arith.constant 0 : i32
    %c0_i32_1 = arith.constant 0 : i32
    return %arg1, %c0_i32, %c0_i32_0 : i32, i32, i32
  }
  func.func @transform_12(%arg0: i32, %arg1: i32) -> (i32, i32, i32) {
    %c0_i32 = arith.constant 0 : i32
    %c0_i32_0 = arith.constant 0 : i32
    %c0_i32_1 = arith.constant 0 : i32
    return %arg0, %c0_i32, %c0_i32_0 : i32, i32, i32
  }
  func.func @transform_13(%arg0: i32, %arg1: i32) -> (i32, i32, i32) {
    %c0_i32 = arith.constant 0 : i32
    %c0_i32_0 = arith.constant 0 : i32
    %c0_i32_1 = arith.constant 0 : i32
    return %arg0, %c0_i32, %c0_i32_0 : i32, i32, i32
  }
}

</mosaic_0001>

<llo_original>
// kernel: tpu_custom_call.1
$region0: #{tpu_custom_call.1}
  #allocation0 [shape = 'u32[]', space=smem, size = 0x4, offset = 0x4, fixed_abs, tag = 'smem constant byte address 0x4 - core index']
  #allocation1 [shape = 'u32[144,128]{1,0:T(1,128)}', space=vmem, size = 0x12000, scoped, tag = 'internal scratch']
  %s0 = inlined_call_operand.hbm [shape: f32[4,8,32], index: 0, kind: input, shape index: {}, may-alias: {0,12}]
  %s1 = inlined_call_operand.hbm [shape: f32[4,16,32], index: 1, kind: input, shape index: {}, may-alias: {1,13}]
  %s2 = inlined_call_operand.vmem [shape: f32[32,8], index: 2, kind: input, shape index: {}]
  %s3 = inlined_call_operand.vmem [shape: bf16[8,32], index: 3, kind: input, shape index: {}]
  %s4 = inlined_call_operand.vmem [shape: f32[32,16], index: 4, kind: input, shape index: {}]
  %s5 = inlined_call_operand.hbm [shape: bf16[16,32], index: 5, kind: input, shape index: {}]
  %s6 = inlined_call_operand.vmem [shape: bf16[2,2,16,32], index: 6, kind: input, shape index: {}]
  %s7 = inlined_call_operand.vmem [shape: bf16[2,2,16,32], index: 7, kind: input, shape index: {}]
  %s8 = inlined_call_operand.hbm [shape: bf16[2,2,16,32], index: 8, kind: input, shape index: {}]
  %s9 = inlined_call_operand.hbm [shape: bf16[2,2,16,32], index: 9, kind: input, shape index: {}]
  %s10 = inlined_call_operand.vmem [shape: bf16[2,6,32,32], index: 10, kind: input, shape index: {}]
  %s11 = inlined_call_operand.hbm [shape: f32[2,16,32], index: 11, kind: input, shape index: {}]
  %s12 = inlined_call_operand.hbm [shape: f32[4,8,32], index: 12, kind: output, shape index: {0}, may-alias: {0,12}]
  %s13 = inlined_call_operand.hbm [shape: f32[4,16,32], index: 13, kind: output, shape index: {1}, may-alias: {1,13}]
  %14 = xla_tuple %s12, %s13
  %s15 = sld [smem:[#allocation0]]
  $region117: #{tpu_custom_call.1} parent=0
    _
  %s17 = ssub.s32 1, %s15
  %s18 = scalar_select 0, %s17, %s15
  $region1: #{tpu_custom_call.1} parent=0
    #allocation2 [shape = 'u8[16384]{0}', space=vmem, size = 0x4000, scoped, tag = 'input window, operand 0']
    #allocation3 [shape = 's32[2]{0}', space=sflag, size = 0x8, scoped, tag = 'scoped memory for tpu_custom_call.1']
    #allocation4 [shape = 's32[2]{0}', space=sflag, size = 0x8, scoped, tag = 'scoped memory for tpu_custom_call.1']
    #allocation5 [shape = 'u8[32768]{0}', space=vmem, size = 0x8000, scoped, tag = 'input window, operand 1']
    #allocation6 [shape = 's32[2]{0}', space=sflag, size = 0x8, scoped, tag = 'scoped memory for tpu_custom_call.1']
    #allocation7 [shape = 'u8[4096]{0}', space=vmem, size = 0x1000, scoped, tag = 'input window, operand 5, single buffered']
    #allocation8 [shape = 'u8[16384]{0}', space=vmem, size = 0x4000, scoped, tag = 'input window, operand 8']
    #allocation9 [shape = 's32[2]{0}', space=sflag, size = 0x8, scoped, tag = 'scoped memory for tpu_custom_call.1']
    #allocation10 [shape = 'u8[16384]{0}', space=vmem, size = 0x4000, scoped, tag = 'input window, operand 9']
    #allocation11 [shape = 'u8[16384]{0}', space=vmem, size = 0x4000, scoped, tag = 'input window, operand 11']
    #allocation12 [shape = 's32[2]{0}', space=sflag, size = 0x8, scoped, tag = 'scoped memory for tpu_custom_call.1']
    #allocation13 [shape = 'u8[16384]{0}', space=vmem, size = 0x4000, scoped, tag = 'output window, operand 0']
    #allocation14 [shape = 'u8[32768]{0}', space=vmem, size = 0x8000, scoped, tag = 'output window, operand 1']
    #allocation15 [shape = 's32[2]{0}', space=sflag, size = 0x8, scoped, tag = 'scoped memory for tpu_custom_call.1']
    %19 = vsyncpa [#allocation3], 0
    %s20 = scalar_lea.sflag [#allocation3], 1
    %21 = vsyncpa %s20, 0
    %22 = vsyncpa [#allocation6], 0
    %s23 = scalar_lea.sflag [#allocation6], 1
    %24 = vsyncpa %s23, 0
    %25 = vsyncpa [#allocation9], 0
    %s26 = scalar_lea.sflag [#allocation9], 1
    %27 = vsyncpa %s26, 0
    %28 = vsyncpa [#allocation12], 0
    %s29 = scalar_lea.sflag [#allocation12], 1
    %30 = vsyncpa %s29, 0
    %31 = vsyncpa [#allocation4], 0
    %s32 = scalar_lea.sflag [#allocation4], 1
    %33 = vsyncpa %s32, 0
    %34 = vsyncpa [#allocation15], 0
    %s35 = scalar_lea.sflag [#allocation15], 1
    %36 = vsyncpa %s35, 0
    loop: start=0, step=1, limit=6
    $region2: #{tpu_custom_call.1} parent=1 // loop_pre_header
      _
    $region3: #{tpu_custom_call.1} parent=1 // loop_header
      %s38 = sphi 0, %s42
      %p39 = scmp.ge.s32.totalorder %s38, 6
      %s45 = sphi 0, %s57
      %s46 = sphi 0, %s53
      %s47 = sphi 0, %s45
      %s48 = sphi 0, %s46
      %s49 = sphi 0, %s47
      %s50 = sphi 0, %s48
      %s60 = sphi 0, %s62
      %s63 = sphi 0, %s60
      %s64 = sphi 0, %s63
      %s80 = sphi 0, %s64
      %s86 = sphi 0, %s88
      %s89 = sphi 0, %s86
      %s90 = sphi 0, %s89
      %s106 = sphi 0, %s90
      %s110 = sphi 0, %s110
      %s112 = sphi 0, %s110
      %s113 = sphi 0, %s112
      %s127 = sphi 0, %s113
      %s131 = sphi 0, %s131
      %s133 = sphi 0, %s131
      %s134 = sphi 0, %s133
      %s148 = sphi 0, %s134
      %s152 = sphi 0, %s152
      %s154 = sphi 0, %s152
      %s155 = sphi 0, %s154
      %s169 = sphi 0, %s155
      %s173 = sphi 0, %s173
      %s175 = sphi 0, %s173
      %s176 = sphi 0, %s175
      %s190 = sphi 0, %s176
      %s196 = sphi 0, %s198
      %s199 = sphi 0, %s196
      %s200 = sphi 0, %s199
      %s216 = sphi 0, %s200
      %s222 = sphi 0, %s224
      %s225 = sphi 0, %s222
      %s226 = sphi 0, %s225
      %s242 = sphi 0, %s226
      %s248 = sphi 0, %s250
      %s251 = sphi 0, %s248
      %s252 = sphi 0, %s251
      %s268 = sphi 0, %s252
      %s274 = sphi 0, %s276
      %s277 = sphi 0, %s274
      %s278 = sphi 0, %s277
      %s294 = sphi 0, %s278
      %s300 = sphi 0, %s302
      %s303 = sphi 0, %s300
      %s304 = sphi 0, %s303
      %s320 = sphi 0, %s304
      %s326 = sphi 0, %s328
      %s329 = sphi 0, %s326
      %s330 = sphi 0, %s329
      %s346 = sphi 0, %s330
      %s352 = sphi 0, %s354
      %s355 = sphi 0, %s352
      %s356 = sphi 0, %s355
      %s372 = sphi 0, %s356
      %s378 = sphi 0, %s380
      %s381 = sphi 0, %s378
      %s382 = sphi 0, %s381
      %s398 = sphi 0, %s382
    $region4: #{tpu_custom_call.1} parent=1 // loop_header_branch
      %41 = sbr.rel (%p39) target = $region8
    $region5: #{tpu_custom_call.1} parent=1 // loop_body
      %s43 = ssub.s32 %s38, 1
      %s44 = ssub.s32 %s38, 2
      %s51 = sadd.s32 1, %s46
      %p52 = scmp.ge.s32.totalorder %s51, 2
      %s53 = scalar_select %p52, 0, %s51
      %s54 = sadd.s32 1, %s45
      %s55 = scalar_select %p52, %s54, %s45
      %p56 = scmp.ge.s32.totalorder %s55, 2
      %s57 = scalar_select %p56, 0, %s55
      %s58 = ssub.s32 %s45, %s57
      %p59 = scmp.eq.s32.totalorder %s58, 0
      %s61 = sadd.s32 %s60, 1
      %s62 = scalar_select %p59, %s60, %s61
      %p65 = pneg %p59
      %p66 = scmp.eq.s32.totalorder %s38, 3
      %p67 = por %p65, %p66
      %p68 = scmp.ne.s32.totalorder %s60, %s63
      %p69 = scmp.eq.s32.totalorder %s38, 0
      %p70 = por %p68, %p69
      %p71 = scmp.ne.s32.totalorder %s60, %s63
      %p72 = scmp.eq.s32.totalorder %s43, 3
      %p73 = por %p71, %p72
      %p74 = scmp.ne.s32.totalorder %s63, %s64
      %p75 = scmp.eq.s32.totalorder %s43, 0
      %p76 = por %p74, %p75
      %p77 = scmp.ne.s32.totalorder %s63, %s64
      %p78 = scmp.eq.s32.totalorder %s44, 3
      %p79 = por %p77, %p78
      %p81 = scmp.ne.s32.totalorder %s64, %s80
      %p82 = scmp.eq.s32.totalorder %s44, 0
      %p83 = por %p81, %p82
      %s84 = ssub.s32 %s45, %s57
      %p85 = scmp.eq.s32.totalorder %s84, 0
      %s87 = sadd.s32 %s86, 1
      %s88 = scalar_select %p85, %s86, %s87
      %p91 = pneg %p85
      %p92 = scmp.eq.s32.totalorder %s38, 3
      %p93 = por %p91, %p92
      %p94 = scmp.ne.s32.totalorder %s86, %s89
      %p95 = scmp.eq.s32.totalorder %s38, 0
      %p96 = por %p94, %p95
      %p97 = scmp.ne.s32.totalorder %s86, %s89
      %p98 = scmp.eq.s32.totalorder %s43, 3
      %p99 = por %p97, %p98
      %p100 = scmp.ne.s32.totalorder %s89, %s90
      %p101 = scmp.eq.s32.totalorder %s43, 0
      %p102 = por %p100, %p101
      %p103 = scmp.ne.s32.totalorder %s89, %s90
      %p104 = scmp.eq.s32.totalorder %s44, 3
      %p105 = por %p103, %p104
      %p107 = scmp.ne.s32.totalorder %s90, %s106
      %p108 = scmp.eq.s32.totalorder %s44, 0
      %p109 = por %p107, %p108
      %s111 = sadd.s32 %s110, 1
      %p114 = scmp.eq.s32.totalorder %s38, 3
      %p115 = scmp.ne.s32.totalorder %s110, %s112
      %p116 = scmp.eq.s32.totalorder %s38, 0
      %p117 = por %p115, %p116
      %p118 = scmp.ne.s32.totalorder %s110, %s112
      %p119 = scmp.eq.s32.totalorder %s43, 3
      %p120 = por %p118, %p119
      %p121 = scmp.ne.s32.totalorder %s112, %s113
      %p122 = scmp.eq.s32.totalorder %s43, 0
      %p123 = por %p121, %p122
      %p124 = scmp.ne.s32.totalorder %s112, %s113
      %p125 = scmp.eq.s32.totalorder %s44, 3
      %p126 = por %p124, %p125
      %p128 = scmp.ne.s32.totalorder %s113, %s127
      %p129 = scmp.eq.s32.totalorder %s44, 0
      %p130 = por %p128, %p129
      %s132 = sadd.s32 %s131, 1
      %p135 = scmp.eq.s32.totalorder %s38, 3
      %p136 = scmp.ne.s32.totalorder %s131, %s133
      %p137 = scmp.eq.s32.totalorder %s38, 0
      %p138 = por %p136, %p137
      %p139 = scmp.ne.s32.totalorder %s131, %s133
      %p140 = scmp.eq.s32.totalorder %s43, 3
      %p141 = por %p139, %p140
      %p142 = scmp.ne.s32.totalorder %s133, %s134
      %p143 = scmp.eq.s32.totalorder %s43, 0
      %p144 = por %p142, %p143
      %p145 = scmp.ne.s32.totalorder %s133, %s134
      %p146 = scmp.eq.s32.totalorder %s44, 3
      %p147 = por %p145, %p146
      %p149 = scmp.ne.s32.totalorder %s134, %s148
      %p150 = scmp.eq.s32.totalorder %s44, 0
      %p151 = por %p149, %p150
      %s153 = sadd.s32 %s152, 1
      %p156 = scmp.eq.s32.totalorder %s38, 3
      %p157 = scmp.ne.s32.totalorder %s152, %s154
      %p158 = scmp.eq.s32.totalorder %s38, 0
      %p159 = por %p157, %p158
      %p160 = scmp.ne.s32.totalorder %s152, %s154
      %p161 = scmp.eq.s32.totalorder %s43, 3
      %p162 = por %p160, %p161
      %p163 = scmp.ne.s32.totalorder %s154, %s155
      %p164 = scmp.eq.s32.totalorder %s43, 0
      %p165 = por %p163, %p164
      %p166 = scmp.ne.s32.totalorder %s154, %s155
      %p167 = scmp.eq.s32.totalorder %s44, 3
      %p168 = por %p166, %p167
      %p170 = scmp.ne.s32.totalorder %s155, %s169
      %p171 = scmp.eq.s32.totalorder %s44, 0
      %p172 = por %p170, %p171
      %s174 = sadd.s32 %s173, 1
      %p177 = scmp.eq.s32.totalorder %s38, 3
      %p178 = scmp.ne.s32.totalorder %s173, %s175
      %p179 = scmp.eq.s32.totalorder %s38, 0
      %p180 = por %p178, %p179
      %p181 = scmp.ne.s32.totalorder %s173, %s175
      %p182 = scmp.eq.s32.totalorder %s43, 3
      %p183 = por %p181, %p182
      %p184 = scmp.ne.s32.totalorder %s175, %s176
      %p185 = scmp.eq.s32.totalorder %s43, 0
      %p186 = por %p184, %p185
      %p187 = scmp.ne.s32.totalorder %s175, %s176
      %p188 = scmp.eq.s32.totalorder %s44, 3
      %p189 = por %p187, %p188
      %p191 = scmp.ne.s32.totalorder %s176, %s190
      %p192 = scmp.eq.s32.totalorder %s44, 0
      %p193 = por %p191, %p192
      %s194 = ssub.s32 %s46, %s53
      %p195 = scmp.eq.s32.totalorder %s194, 0
      %s197 = sadd.s32 %s196, 1
      %s198 = scalar_select %p195, %s196, %s197
      %p201 = pneg %p195
      %p202 = scmp.eq.s32.totalorder %s38, 3
      %p203 = por %p201, %p202
      %p204 = scmp.ne.s32.totalorder %s196, %s199
      %p205 = scmp.eq.s32.totalorder %s38, 0
      %p206 = por %p204, %p205
      %p207 = scmp.ne.s32.totalorder %s196, %s199
      %p208 = scmp.eq.s32.totalorder %s43, 3
      %p209 = por %p207, %p208
      %p210 = scmp.ne.s32.totalorder %s199, %s200
      %p211 = scmp.eq.s32.totalorder %s43, 0
      %p212 = por %p210, %p211
      %p213 = scmp.ne.s32.totalorder %s199, %s200
      %p214 = scmp.eq.s32.totalorder %s44, 3
      %p215 = por %p213, %p214
      %p217 = scmp.ne.s32.totalorder %s200, %s216
      %p218 = scmp.eq.s32.totalorder %s44, 0
      %p219 = por %p217, %p218
      %s220 = ssub.s32 %s46, %s53
      %p221 = scmp.eq.s32.totalorder %s220, 0
      %s223 = sadd.s32 %s222, 1
      %s224 = scalar_select %p221, %s222, %s223
      %p227 = pneg %p221
      %p228 = scmp.eq.s32.totalorder %s38, 3
      %p229 = por %p227, %p228
      %p230 = scmp.ne.s32.totalorder %s222, %s225
      %p231 = scmp.eq.s32.totalorder %s38, 0
      %p232 = por %p230, %p231
      %p233 = scmp.ne.s32.totalorder %s222, %s225
      %p234 = scmp.eq.s32.totalorder %s43, 3
      %p235 = por %p233, %p234
      %p236 = scmp.ne.s32.totalorder %s225, %s226
      %p237 = scmp.eq.s32.totalorder %s43, 0
      %p238 = por %p236, %p237
      %p239 = scmp.ne.s32.totalorder %s225, %s226
      %p240 = scmp.eq.s32.totalorder %s44, 3
      %p241 = por %p239, %p240
      %p243 = scmp.ne.s32.totalorder %s226, %s242
      %p244 = scmp.eq.s32.totalorder %s44, 0
      %p245 = por %p243, %p244
      %s246 = ssub.s32 %s46, %s53
      %p247 = scmp.eq.s32.totalorder %s246, 0
      %s249 = sadd.s32 %s248, 1
      %s250 = scalar_select %p247, %s248, %s249
      %p253 = pneg %p247
      %p254 = scmp.eq.s32.totalorder %s38, 3
      %p255 = por %p253, %p254
      %p256 = scmp.ne.s32.totalorder %s248, %s251
      %p257 = scmp.eq.s32.totalorder %s38, 0
      %p258 = por %p256, %p257
      %p259 = scmp.ne.s32.totalorder %s248, %s251
      %p260 = scmp.eq.s32.totalorder %s43, 3
      %p261 = por %p259, %p260
      %p262 = scmp.ne.s32.totalorder %s251, %s252
      %p263 = scmp.eq.s32.totalorder %s43, 0
      %p264 = por %p262, %p263
      %p265 = scmp.ne.s32.totalorder %s251, %s252
      %p266 = scmp.eq.s32.totalorder %s44, 3
      %p267 = por %p265, %p266
      %p269 = scmp.ne.s32.totalorder %s252, %s268
      %p270 = scmp.eq.s32.totalorder %s44, 0
      %p271 = por %p269, %p270
      %s272 = ssub.s32 %s46, %s53
      %p273 = scmp.eq.s32.totalorder %s272, 0
      %s275 = sadd.s32 %s274, 1
      %s276 = scalar_select %p273, %s274, %s275
      %p279 = pneg %p273
      %p280 = scmp.eq.s32.totalorder %s38, 3
      %p281 = por %p279, %p280
      %p282 = scmp.ne.s32.totalorder %s274, %s277
      %p283 = scmp.eq.s32.totalorder %s38, 0
      %p284 = por %p282, %p283
      %p285 = scmp.ne.s32.totalorder %s274, %s277
      %p286 = scmp.eq.s32.totalorder %s43, 3
      %p287 = por %p285, %p286
      %p288 = scmp.ne.s32.totalorder %s277, %s278
      %p289 = scmp.eq.s32.totalorder %s43, 0
      %p290 = por %p288, %p289
      %p291 = scmp.ne.s32.totalorder %s277, %s278
      %p292 = scmp.eq.s32.totalorder %s44, 3
      %p293 = por %p291, %p292
      %p295 = scmp.ne.s32.totalorder %s278, %s294
      %p296 = scmp.eq.s32.totalorder %s44, 0
      %p297 = por %p295, %p296
      %s298 = ssub.s32 %s46, %s53
      %p299 = scmp.eq.s32.totalorder %s298, 0
      %s301 = sadd.s32 %s300, 1
      %s302 = scalar_select %p299, %s300, %s301
      %p305 = pneg %p299
      %p306 = scmp.eq.s32.totalorder %s38, 3
      %p307 = por %p305, %p306
      %p308 = scmp.ne.s32.totalorder %s300, %s303
      %p309 = scmp.eq.s32.totalorder %s38, 0
      %p310 = por %p308, %p309
      %p311 = scmp.ne.s32.totalorder %s300, %s303
      %p312 = scmp.eq.s32.totalorder %s43, 3
      %p313 = por %p311, %p312
      %p314 = scmp.ne.s32.totalorder %s303, %s304
      %p315 = scmp.eq.s32.totalorder %s43, 0
      %p316 = por %p314, %p315
      %p317 = scmp.ne.s32.totalorder %s303, %s304
      %p318 = scmp.eq.s32.totalorder %s44, 3
      %p319 = por %p317, %p318
      %p321 = scmp.ne.s32.totalorder %s304, %s320
      %p322 = scmp.eq.s32.totalorder %s44, 0
      %p323 = por %p321, %p322
      %s324 = ssub.s32 %s46, %s53
      %p325 = scmp.eq.s32.totalorder %s324, 0
      %s327 = sadd.s32 %s326, 1
      %s328 = scalar_select %p325, %s326, %s327
      %p331 = pneg %p325
      %p332 = scmp.eq.s32.totalorder %s38, 3
      %p333 = por %p331, %p332
      %p334 = scmp.ne.s32.totalorder %s326, %s329
      %p335 = scmp.eq.s32.totalorder %s38, 0
      %p336 = por %p334, %p335
      %p337 = scmp.ne.s32.totalorder %s326, %s329
      %p338 = scmp.eq.s32.totalorder %s43, 3
      %p339 = por %p337, %p338
      %p340 = scmp.ne.s32.totalorder %s329, %s330
      %p341 = scmp.eq.s32.totalorder %s43, 0
      %p342 = por %p340, %p341
      %p343 = scmp.ne.s32.totalorder %s329, %s330
      %p344 = scmp.eq.s32.totalorder %s44, 3
      %p345 = por %p343, %p344
      %p347 = scmp.ne.s32.totalorder %s330, %s346
      %p348 = scmp.eq.s32.totalorder %s44, 0
      %p349 = por %p347, %p348
      %s350 = ssub.s32 %s45, %s57
      %p351 = scmp.eq.s32.totalorder %s350, 0
      %s353 = sadd.s32 %s352, 1
      %s354 = scalar_select %p351, %s352, %s353
      %p357 = pneg %p351
      %p358 = scmp.eq.s32.totalorder %s38, 3
      %p359 = por %p357, %p358
      %p360 = scmp.ne.s32.totalorder %s352, %s355
      %p361 = scmp.eq.s32.totalorder %s38, 0
      %p362 = por %p360, %p361
      %p363 = scmp.ne.s32.totalorder %s352, %s355
      %p364 = scmp.eq.s32.totalorder %s43, 3
      %p365 = por %p363, %p364
      %p366 = scmp.ne.s32.totalorder %s355, %s356
      %p367 = scmp.eq.s32.totalorder %s43, 0
      %p368 = por %p366, %p367
      %p369 = scmp.ne.s32.totalorder %s355, %s356
      %p370 = scmp.eq.s32.totalorder %s44, 3
      %p371 = por %p369, %p370
      %p373 = scmp.ne.s32.totalorder %s356, %s372
      %p374 = scmp.eq.s32.totalorder %s44, 0
      %p375 = por %p373, %p374
      %s376 = ssub.s32 %s45, %s57
      %p377 = scmp.eq.s32.totalorder %s376, 0
      %s379 = sadd.s32 %s378, 1
      %s380 = scalar_select %p377, %s378, %s379
      %p383 = pneg %p377
      %p384 = scmp.eq.s32.totalorder %s38, 3
      %p385 = por %p383, %p384
      %p386 = scmp.ne.s32.totalorder %s378, %s381
      %p387 = scmp.eq.s32.totalorder %s38, 0
      %p388 = por %p386, %p387
      %p389 = scmp.ne.s32.totalorder %s378, %s381
      %p390 = scmp.eq.s32.totalorder %s43, 3
      %p391 = por %p389, %p390
      %p392 = scmp.ne.s32.totalorder %s381, %s382
      %p393 = scmp.eq.s32.totalorder %s43, 0
      %p394 = por %p392, %p393
      %p395 = scmp.ne.s32.totalorder %s381, %s382
      %p396 = scmp.eq.s32.totalorder %s44, 3
      %p397 = por %p395, %p396
      %p399 = scmp.ne.s32.totalorder %s382, %s398
      %p400 = scmp.eq.s32.totalorder %s44, 0
      %p401 = por %p399, %p400
      %p402 = scmp.le.s32.totalorder 1, %s38
      %p403 = scmp.lt.s32.totalorder %s38, 5
      %p404 = pnand %p402, %p403
      %p405 = pneg %p404
      // Predicated region
      $region9: #{tpu_custom_call.1} parent=5 // pred_check
        _
      $region10: #{tpu_custom_call.1} parent=5 // pred_check_branch
        %407 = sbr.rel (%p404) target = $region12
      $region11: #{tpu_custom_call.1} parent=5 // pred_region
        %s408 = ssub.s32 %s38, 1
        // Predicated region
        $region13: #{tpu_custom_call.1} parent=11 // pred_check
          %p409 = pneg %p123
        $region14: #{tpu_custom_call.1} parent=11 // pred_check_branch
          %411 = sbr.rel (%p409) target = $region16
        $region15: #{tpu_custom_call.1} parent=11 // pred_region
          _
        $region16: #{tpu_custom_call.1} parent=11 // pred_fallthru
          _
        // Predicated region
        $region17: #{tpu_custom_call.1} parent=11 // pred_check
          %p412 = pneg %p144
        $region18: #{tpu_custom_call.1} parent=11 // pred_check_branch
          %414 = sbr.rel (%p412) target = $region20
        $region19: #{tpu_custom_call.1} parent=11 // pred_region
          _
        $region20: #{tpu_custom_call.1} parent=11 // pred_fallthru
          _
        // Predicated region
        $region21: #{tpu_custom_call.1} parent=11 // pred_check
          %p415 = pneg %p165
        $region22: #{tpu_custom_call.1} parent=11 // pred_check_branch
          %417 = sbr.rel (%p415) target = $region24
        $region23: #{tpu_custom_call.1} parent=11 // pred_region
          _
        $region24: #{tpu_custom_call.1} parent=11 // pred_fallthru
          _
        // Predicated region
        $region25: #{tpu_custom_call.1} parent=11 // pred_check
          %p418 = pneg %p186
        $region26: #{tpu_custom_call.1} parent=11 // pred_check_branch
          %420 = sbr.rel (%p418) target = $region28
        $region27: #{tpu_custom_call.1} parent=11 // pred_region
          %s422 = ssub.s32 128, 128
          %423 = vsyncadd [#allocation6], %s422
          %s424 = sshll.u32 [#allocation7], 4
          %s425 = int_to_ptr.vmem [resolvable:$true] %s424
          %430 = dma.hbm_to_vmem [thread:$0]  %s5, 128, %s425, [#allocation6], 64, 64, 4
        $region28: #{tpu_custom_call.1} parent=11 // pred_fallthru
          _
      $region12: #{tpu_custom_call.1} parent=5 // pred_fallthru
        _
      %p431 = scmp.lt.s32.totalorder %s38, 4
      // Predicated region
      $region29: #{tpu_custom_call.1} parent=5 // pred_check
        %p432 = pneg %p431
      $region30: #{tpu_custom_call.1} parent=5 // pred_check_branch
        %434 = sbr.rel (%p432) target = $region32
      $region31: #{tpu_custom_call.1} parent=5 // pred_region
        // Predicated region
        $region33: #{tpu_custom_call.1} parent=31 // pred_check
          %p435 = pneg %p70
        $region34: #{tpu_custom_call.1} parent=31 // pred_check_branch
          %437 = sbr.rel (%p435) target = $region36
        $region35: #{tpu_custom_call.1} parent=31 // pred_region
          %s438 = sand.u32 %s60, 1
          %s439 = scalar_lea.sflag [#allocation3], %s438
          %s440 = sand.u32 %s60, 1
          %s441 = smul.addr %s440, 16
          %s442 = scalar_lea.vmem [#allocation2], %s441
          %s443 = smul.u32 2, %s45
          %s445 = ssub.s32 256, 256
          %446 = vsyncadd %s439, %s445
          %s447 = smul.addr %s443, 128
          %s448 = scalar_lea.hbm %s0, %s447
          %s449 = sshll.u32 %s442, 4
          %s450 = int_to_ptr.vmem [resolvable:$true] %s449
          %455 = dma.hbm_to_vmem [thread:$0]  %s448, 256, %s450, %s439, 128, 128, 8
        $region36: #{tpu_custom_call.1} parent=31 // pred_fallthru
          _
        // Predicated region
        $region37: #{tpu_custom_call.1} parent=31 // pred_check
          %p456 = pneg %p96
        $region38: #{tpu_custom_call.1} parent=31 // pred_check_branch
          %458 = sbr.rel (%p456) target = $region40
        $region39: #{tpu_custom_call.1} parent=31 // pred_region
          %s459 = sand.u32 %s38, 1
          %s460 = scalar_lea.sflag [#allocation6], %s459
          %s461 = sand.u32 %s86, 1
          %s462 = smul.addr %s461, 32
          %s463 = scalar_lea.vmem [#allocation5], %s462
          %s464 = smul.u32 2, %s45
          %s466 = ssub.s32 512, 512
          %467 = vsyncadd %s460, %s466
          %s468 = smul.addr %s464, 2
          %s469 = smul.addr %s468, 128
          %s470 = scalar_lea.hbm %s1, %s469
          %s471 = sshll.u32 %s463, 4
          %s472 = int_to_ptr.vmem [resolvable:$true] %s471
          %477 = dma.hbm_to_vmem [thread:$0]  %s470, 512, %s472, %s460, 128, 128, 8
        $region40: #{tpu_custom_call.1} parent=31 // pred_fallthru
          _
        // Predicated region
        $region41: #{tpu_custom_call.1} parent=31 // pred_check
          %p478 = pneg %p206
        $region42: #{tpu_custom_call.1} parent=31 // pred_check_branch
          %480 = sbr.rel (%p478) target = $region44
        $region43: #{tpu_custom_call.1} parent=31 // pred_region
          %p481 = scmp.lt.s32.totalorder %s46, 1
          %s482 = scalar_select %p481, %s46, 1
          %s483 = smul.addr %s482, 4
          %s484 = smul.addr %s483, 4
          %s485 = scalar_lea.vmem %s6, %s484
        $region44: #{tpu_custom_call.1} parent=31 // pred_fallthru
          _
        // Predicated region
        $region45: #{tpu_custom_call.1} parent=31 // pred_check
          %p486 = pneg %p232
        $region46: #{tpu_custom_call.1} parent=31 // pred_check_branch
          %488 = sbr.rel (%p486) target = $region48
        $region47: #{tpu_custom_call.1} parent=31 // pred_region
          %p489 = scmp.lt.s32.totalorder %s46, 1
          %s490 = scalar_select %p489, %s46, 1
          %s491 = smul.addr %s490, 4
          %s492 = smul.addr %s491, 4
          %s493 = scalar_lea.vmem %s7, %s492
        $region48: #{tpu_custom_call.1} parent=31 // pred_fallthru
          _
        // Predicated region
        $region49: #{tpu_custom_call.1} parent=31 // pred_check
          %p494 = pneg %p258
        $region50: #{tpu_custom_call.1} parent=31 // pred_check_branch
          %496 = sbr.rel (%p494) target = $region52
        $region51: #{tpu_custom_call.1} parent=31 // pred_region
          %s497 = sand.u32 %s38, 1
          %s498 = scalar_lea.sflag [#allocation9], %s497
          %s499 = sand.u32 %s248, 1
          %s500 = smul.addr %s499, 16
          %s501 = scalar_lea.vmem [#allocation8], %s500
          %s503 = ssub.s32 256, 256
          %504 = vsyncadd %s498, %s503
          %s505 = smul.addr %s46, 4
          %s506 = smul.addr %s505, 64
          %s507 = scalar_lea.hbm %s8, %s506
          %s508 = sshll.u32 %s501, 4
          %s509 = int_to_ptr.vmem [resolvable:$true] %s508
          %514 = dma.hbm_to_vmem [thread:$0]  %s507, 256, %s509, %s498, 64, 64, 4
        $region52: #{tpu_custom_call.1} parent=31 // pred_fallthru
          _
        // Predicated region
        $region53: #{tpu_custom_call.1} parent=31 // pred_check
          %p515 = pneg %p284
        $region54: #{tpu_custom_call.1} parent=31 // pred_check_branch
          %517 = sbr.rel (%p515) target = $region56
        $region55: #{tpu_custom_call.1} parent=31 // pred_region
          %s518 = sand.u32 %s38, 1
          %s519 = scalar_lea.sflag [#allocation9], %s518
          %s520 = sand.u32 %s274, 1
          %s521 = smul.addr %s520, 16
          %s522 = scalar_lea.vmem [#allocation10], %s521
          %s524 = ssub.s32 256, 256
          %525 = vsyncadd %s519, %s524
          %s526 = smul.addr %s46, 4
          %s527 = smul.addr %s526, 64
          %s528 = scalar_lea.hbm %s9, %s527
          %s529 = sshll.u32 %s522, 4
          %s530 = int_to_ptr.vmem [resolvable:$true] %s529
          %535 = dma.hbm_to_vmem [thread:$0]  %s528, 256, %s530, %s519, 64, 64, 4
        $region56: #{tpu_custom_call.1} parent=31 // pred_fallthru
          _
        // Predicated region
        $region57: #{tpu_custom_call.1} parent=31 // pred_check
          %p536 = pneg %p310
        $region58: #{tpu_custom_call.1} parent=31 // pred_check_branch
          %538 = sbr.rel (%p536) target = $region60
        $region59: #{tpu_custom_call.1} parent=31 // pred_region
          %p539 = scmp.lt.s32.totalorder %s46, 1
          %s540 = scalar_select %p539, %s46, 1
          %s541 = smul.addr %s540, 24
          %s542 = smul.addr %s541, 4
          %s543 = scalar_lea.vmem %s10, %s542
        $region60: #{tpu_custom_call.1} parent=31 // pred_fallthru
          _
        // Predicated region
        $region61: #{tpu_custom_call.1} parent=31 // pred_check
          %p544 = pneg %p336
        $region62: #{tpu_custom_call.1} parent=31 // pred_check_branch
          %546 = sbr.rel (%p544) target = $region64
        $region63: #{tpu_custom_call.1} parent=31 // pred_region
          %s547 = sand.u32 %s326, 1
          %s548 = scalar_lea.sflag [#allocation12], %s547
          %s549 = sand.u32 %s326, 1
          %s550 = smul.addr %s549, 16
          %s551 = scalar_lea.vmem [#allocation11], %s550
          %s553 = ssub.s32 256, 256
          %554 = vsyncadd %s548, %s553
          %s555 = smul.addr %s46, 2
          %s556 = smul.addr %s555, 128
          %s557 = scalar_lea.hbm %s11, %s556
          %s558 = sshll.u32 %s551, 4
          %s559 = int_to_ptr.vmem [resolvable:$true] %s558
          %564 = dma.hbm_to_vmem [thread:$0]  %s557, 256, %s559, %s548, 128, 128, 8
        $region64: #{tpu_custom_call.1} parent=31 // pred_fallthru
          _
      $region32: #{tpu_custom_call.1} parent=5 // pred_fallthru
        _
      %p565 = scmp.le.s32.totalorder 1, %s38
      %p566 = scmp.lt.s32.totalorder %s38, 5
      %p567 = pnand %p565, %p566
      %p568 = pneg %p567
      // Predicated region
      $region65: #{tpu_custom_call.1} parent=5 // pred_check
        _
      $region66: #{tpu_custom_call.1} parent=5 // pred_check_branch
        %570 = sbr.rel (%p567) target = $region68
      $region67: #{tpu_custom_call.1} parent=5 // pred_region
        %s571 = ssub.s32 %s38, 1
        %s572 = sand.u32 %s63, 1
        %s573 = scalar_lea.sflag [#allocation3], %s572
        %s574 = sand.u32 %s63, 1
        %s575 = smul.addr %s574, 16
        %s576 = scalar_lea.vmem [#allocation2], %s575
        // Predicated region
        $region69: #{tpu_custom_call.1} parent=67 // pred_check
          %p577 = pneg %p76
        $region70: #{tpu_custom_call.1} parent=67 // pred_check_branch
          %579 = sbr.rel (%p577) target = $region72
        $region71: #{tpu_custom_call.1} parent=67 // pred_region
          %580 = dma.done %s573, 256
        $region72: #{tpu_custom_call.1} parent=67 // pred_fallthru
          _
        %s581 = sand.u32 %s43, 1
        %s582 = scalar_lea.sflag [#allocation6], %s581
        %s583 = sand.u32 %s89, 1
        %s584 = smul.addr %s583, 32
        %s585 = scalar_lea.vmem [#allocation5], %s584
        // Predicated region
        $region73: #{tpu_custom_call.1} parent=67 // pred_check
          %p586 = pneg %p102
        $region74: #{tpu_custom_call.1} parent=67 // pred_check_branch
          %588 = sbr.rel (%p586) target = $region76
        $region75: #{tpu_custom_call.1} parent=67 // pred_region
          %589 = dma.done %s582, 512
        $region76: #{tpu_custom_call.1} parent=67 // pred_fallthru
          _
        // Predicated region
        $region77: #{tpu_custom_call.1} parent=67 // pred_check
          %p590 = pneg %p186
        $region78: #{tpu_custom_call.1} parent=67 // pred_check_branch
          %592 = sbr.rel (%p590) target = $region80
        $region79: #{tpu_custom_call.1} parent=67 // pred_region
          %593 = dma.done [#allocation6], 128
        $region80: #{tpu_custom_call.1} parent=67 // pred_fallthru
          _
        %s594 = sand.u32 %s43, 1
        %s595 = scalar_lea.sflag [#allocation9], %s594
        %s596 = sand.u32 %s251, 1
        %s597 = smul.addr %s596, 16
        %s598 = scalar_lea.vmem [#allocation8], %s597
        // Predicated region
        $region81: #{tpu_custom_call.1} parent=67 // pred_check
          %p599 = pneg %p264
        $region82: #{tpu_custom_call.1} parent=67 // pred_check_branch
          %601 = sbr.rel (%p599) target = $region84
        $region83: #{tpu_custom_call.1} parent=67 // pred_region
          %602 = dma.done %s595, 256
        $region84: #{tpu_custom_call.1} parent=67 // pred_fallthru
          _
        %s603 = sand.u32 %s43, 1
        %s604 = scalar_lea.sflag [#allocation9], %s603
        %s605 = sand.u32 %s277, 1
        %s606 = smul.addr %s605, 16
        %s607 = scalar_lea.vmem [#allocation10], %s606
        // Predicated region
        $region85: #{tpu_custom_call.1} parent=67 // pred_check
          %p608 = pneg %p290
        $region86: #{tpu_custom_call.1} parent=67 // pred_check_branch
          %610 = sbr.rel (%p608) target = $region88
        $region87: #{tpu_custom_call.1} parent=67 // pred_region
          %611 = dma.done %s604, 256
        $region88: #{tpu_custom_call.1} parent=67 // pred_fallthru
          _
        %s612 = sand.u32 %s329, 1
        %s613 = scalar_lea.sflag [#allocation12], %s612
        %s614 = sand.u32 %s329, 1
        %s615 = smul.addr %s614, 16
        %s616 = scalar_lea.vmem [#allocation11], %s615
        // Predicated region
        $region89: #{tpu_custom_call.1} parent=67 // pred_check
          %p617 = pneg %p342
        $region90: #{tpu_custom_call.1} parent=67 // pred_check_branch
          %619 = sbr.rel (%p617) target = $region92
        $region91: #{tpu_custom_call.1} parent=67 // pred_region
          %620 = dma.done %s613, 256
        $region92: #{tpu_custom_call.1} parent=67 // pred_fallthru
          _
        %s621 = sand.u32 %s63, 1
        %s622 = scalar_lea.sflag [#allocation3], %s621
        %s623 = sand.u32 %s63, 1
        %s624 = smul.addr %s623, 16
        %s625 = scalar_lea.vmem [#allocation2], %s624
        %p626 = pneg %p76
        %p627 = pneg %p73
        %s628 = sand.u32 %s43, 1
        %s629 = scalar_lea.sflag [#allocation6], %s628
        %s630 = sand.u32 %s89, 1
        %s631 = smul.addr %s630, 32
        %s632 = scalar_lea.vmem [#allocation5], %s631
        %p633 = pneg %p102
        %p634 = pneg %p99
        %p635 = pneg %p123
        %p636 = pneg %p120
        %p637 = pneg %p144
        %p638 = pneg %p141
        %p639 = pneg %p165
        %p640 = pneg %p162
        %p641 = pneg %p186
        %p642 = pneg %p183
        %p643 = scmp.lt.s32.totalorder %s48, 1
        %s644 = scalar_select %p643, %s48, 1
        %s645 = smul.addr %s644, 4
        %s646 = smul.addr %s645, 4
        %s647 = scalar_lea.vmem %s6, %s646
        %p648 = pneg %p212
        %p649 = pneg %p209
        %p650 = scmp.lt.s32.totalorder %s48, 1
        %s651 = scalar_select %p650, %s48, 1
        %s652 = smul.addr %s651, 4
        %s653 = smul.addr %s652, 4
        %s654 = scalar_lea.vmem %s7, %s653
        %p655 = pneg %p238
        %p656 = pneg %p235
        %s657 = sand.u32 %s43, 1
        %s658 = scalar_lea.sflag [#allocation9], %s657
        %s659 = sand.u32 %s251, 1
        %s660 = smul.addr %s659, 16
        %s661 = scalar_lea.vmem [#allocation8], %s660
        %p662 = pneg %p264
        %p663 = pneg %p261
        %s664 = sand.u32 %s43, 1
        %s665 = scalar_lea.sflag [#allocation9], %s664
        %s666 = sand.u32 %s277, 1
        %s667 = smul.addr %s666, 16
        %s668 = scalar_lea.vmem [#allocation10], %s667
        %p669 = pneg %p290
        %p670 = pneg %p287
        %p671 = scmp.lt.s32.totalorder %s48, 1
        %s672 = scalar_select %p671, %s48, 1
        %s673 = smul.addr %s672, 24
        %s674 = smul.addr %s673, 4
        %s675 = scalar_lea.vmem %s10, %s674
        %p676 = pneg %p316
        %p677 = pneg %p313
        %s678 = sand.u32 %s329, 1
        %s679 = scalar_lea.sflag [#allocation12], %s678
        %s680 = sand.u32 %s329, 1
        %s681 = smul.addr %s680, 16
        %s682 = scalar_lea.vmem [#allocation11], %s681
        %p683 = pneg %p342
        %p684 = pneg %p339
        %p685 = pneg %p368
        %p686 = pneg %p365
        %s687 = sand.u32 %s355, 1
        %s688 = scalar_lea.sflag [#allocation4], %s687
        %s689 = sand.u32 %s355, 1
        %s690 = smul.addr %s689, 16
        %s691 = scalar_lea.vmem [#allocation13], %s690
        %p692 = pneg %p394
        %p693 = pneg %p391
        %s694 = sand.u32 %s381, 1
        %s695 = scalar_lea.sflag [#allocation15], %s694
        %s696 = sand.u32 %s381, 1
        %s697 = smul.addr %s696, 32
        %s698 = scalar_lea.vmem [#allocation14], %s697
        %s699 = smul.u32 2, %s47
        %s700 = smul.u32 2, %s47
        %p701 = scmp.lt.s32.totalorder %s48, 1
        %s702 = scalar_select %p701, %s48, 1
        %s703 = smul.addr %s702, 4
        %s704 = smul.addr %s703, 4
        %s705 = scalar_lea.vmem %s6, %s704
        %p706 = scmp.lt.s32.totalorder %s48, 1
        %s707 = scalar_select %p706, %s48, 1
        %s708 = smul.addr %s707, 4
        %s709 = smul.addr %s708, 4
        %s710 = scalar_lea.vmem %s7, %s709
        %p711 = scmp.lt.s32.totalorder %s48, 1
        %s712 = scalar_select %p711, %s48, 1
        %s713 = smul.addr %s712, 24
        %s714 = smul.addr %s713, 4
        %s715 = scalar_lea.vmem %s10, %s714
        %s716 = smul.u32 2, %s47
        %s717 = smul.u32 2, %s47
        %p719 = scmp.eq.s32.totalorder %s48, 0
        // Predicated region
        $region93: #{tpu_custom_call.1} parent=67 // pred_check
          %p720 = pneg %p719
        $region94: #{tpu_custom_call.1} parent=67 // pred_check_branch
          %722 = sbr.rel (%p720) target = $region96
        $region95: #{tpu_custom_call.1} parent=67 // pred_region
          %v723 = vld [vmem:[%s576] sm:$0xff]
          %v724 = vld [vmem:[%s576 + $0x8] sm:$0xff]
          %vm725 = vcmask 261120
          %726 = vst.msk [vmem:[%s691] sm:$0xff] %vm725, %v723
          %727 = vst.msk [vmem:[%s691 + $0x8] sm:$0xff] %vm725, %v724
          %v728 = vld [vmem:[%s585] sm:$0xff]
          %v729 = vld [vmem:[%s585 + $0x8] sm:$0xff]
          %v730 = vld [vmem:[%s585 + $0x10] sm:$0xff]
          %v731 = vld [vmem:[%s585 + $0x18] sm:$0xff]
          %732 = vst.msk [vmem:[%s698] sm:$0xff] %vm725, %v728
          %733 = vst.msk [vmem:[%s698 + $0x8] sm:$0xff] %vm725, %v729
          %734 = vst.msk [vmem:[%s698 + $0x10] sm:$0xff] %vm725, %v730
          %735 = vst.msk [vmem:[%s698 + $0x18] sm:$0xff] %vm725, %v731
        $region96: #{tpu_custom_call.1} parent=67 // pred_fallthru
          _
        %v736 = vld [vmem:[%s691] sm:$0xff]
        %v737 = vld [vmem:[%s691 + $0x8] sm:$0xff]
        %v738 = vld [vmem:[%s698] sm:$0xff]
        %v739 = vld [vmem:[%s698 + $0x8] sm:$0xff]
        %v740 = vld [vmem:[%s698 + $0x10] sm:$0xff]
        %v741 = vld [vmem:[%s698 + $0x18] sm:$0xff]
        %v742 = vld [vmem:[%s616] sm:$0xff]
        %v743 = vld [vmem:[%s616 + $0x8] sm:$0xff]
        %745 = vrot.lane.b32.xlu0 %v737, 32
        %v746 = vpop.permute.xlu0 %745
        %vm748 = vcmask 261120
        %v749 = vsel %vm748, %v736, %v746
        %752 = vrot.lane.b32.xlu0 %v740, 32
        %v753 = vpop.permute.xlu0 %752
        %754 = vrot.lane.b32.xlu0 %v741, 32
        %v755 = vpop.permute.xlu0 %754
        %v758 = vsel %vm748, %v738, %v753
        %v759 = vsel %vm748, %v739, %v755
        %v760 = vld [vmem:[%s2] sm:$0xff]
        %v761 = vld [vmem:[%s2 + $0x8] sm:$0xff]
        %v762 = vld [vmem:[%s2 + $0x10] sm:$0xff]
        %v763 = vld [vmem:[%s2 + $0x18] sm:$0xff]
        %vm764 = vcmask 64512
        %v766 = vsel %vm764, %v760, 0
        %v769 = vsel %vm764, %v761, 0
        %v772 = vsel %vm764, %v762, 0
        %v775 = vsel %vm764, %v763, 0
        %777 = vmatprep.subr.mxu0 0.0
        %778 = vmatpush1.msra.mxu0 0.0
        %779 = vmatprep.subr.mxu0 0.0
        %780 = vmatpush1.msra.mxu0 0.0
        %781 = vmatprep.subr.mxu0 0.0
        %782 = vmatpush1.msra.mxu0 0.0
        %783 = vmatprep.subr.mxu0 0.0
        %784 = vmatpush1.msra.mxu0 0.0
        %785 = vmatprep.subr.mxu0 0.0
        %786 = vmatpush1.msra.mxu0 0.0
        %787 = vmatprep.subr.mxu0 0.0
        %788 = vmatpush1.msra.mxu0 0.0
        %789 = vmatprep.subr.mxu0 0.0
        %790 = vmatpush1.msra.mxu0 0.0
        %791 = vmatprep.subr.mxu0 0.0
        %792 = vmatpush1.msra.mxu0 0.0
        %793 = vmatprep.subr.mxu0 0.0
        %794 = vmatpush1.msra.mxu0 0.0
        %795 = vmatprep.subr.mxu0 0.0
        %796 = vmatpush1.msra.mxu0 0.0
        %797 = vmatprep.subr.mxu0 0.0
        %798 = vmatpush1.msra.mxu0 0.0
        %799 = vmatprep.subr.mxu0 0.0
        %800 = vmatpush1.msra.mxu0 0.0
        %801 = vmatprep.subr.mxu0 0.0
        %802 = vmatpush1.msra.mxu0 0.0
        %803 = vmatprep.subr.mxu0 0.0
        %804 = vmatpush1.msra.mxu0 0.0
        %805 = vmatprep.subr.mxu0 0.0
        %806 = vmatpush1.msra.mxu0 0.0
        %807 = vmatprep.subr.mxu0 0.0
        %808 = vmatpush1.msra.mxu0 %v749
        %809 = vmatprep.subr.mxu0 0.0
        %810 = vmatpush2.msra.mxu0 0.0
        %811 = vmatprep.subr.mxu0 0.0
        %812 = vmatpush2.msra.mxu0 0.0
        %813 = vmatprep.subr.mxu0 0.0
        %814 = vmatpush2.msra.mxu0 0.0
        %815 = vmatprep.subr.mxu0 0.0
        %816 = vmatpush2.msra.mxu0 0.0
        %817 = vmatprep.subr.mxu0 0.0
        %818 = vmatpush2.msra.mxu0 0.0
        %819 = vmatprep.subr.mxu0 0.0
        %820 = vmatpush2.msra.mxu0 0.0
        %821 = vmatprep.subr.mxu0 0.0
        %822 = vmatpush2.msra.mxu0 0.0
        %823 = vmatprep.subr.mxu0 0.0
        %824 = vmatpush2.msra.mxu0 0.0
        %825 = vmatprep.subr.mxu0 0.0
        %826 = vmatpush2.msra.mxu0 0.0
        %827 = vmatprep.subr.mxu0 0.0
        %828 = vmatpush2.msra.mxu0 0.0
        %829 = vmatprep.subr.mxu0 0.0
        %830 = vmatpush2.msra.mxu0 0.0
        %831 = vmatprep.subr.mxu0 0.0
        %832 = vmatpush2.msra.mxu0 0.0
        %833 = vmatprep.subr.mxu0 0.0
        %834 = vmatpush2.msra.mxu0 0.0
        %835 = vmatprep.subr.mxu0 0.0
        %836 = vmatpush2.msra.mxu0 0.0
        %837 = vmatprep.subr.mxu0 0.0
        %838 = vmatpush2.msra.mxu0 0.0
        %839 = vmatprep.subr.mxu0 0.0
        %840 = vmatpush2.msra.mxu0 0.0
        %841 = vmatprep.mubr.f32.mxu0 0.0
        %842 = vmatmul.mubr.f32.gmra.mxu0 %v766
        %v843 = vpop.f32.mrf.mxu0
        %v844 = vadd.f32 0.0, %v843
        %v845 = vpop.f32.mrf.mxu0
        %846 = vmatprep.mubr.f32.mxu0 0.0
        %847 = vmatmul.mubr.f32.gmra.mxu0 %v769
        %v848 = vpop.f32.mrf.mxu0
        %v849 = vadd.f32 0.0, %v848
        %v850 = vpop.f32.mrf.mxu0
        %851 = vmatprep.mubr.f32.mxu0 0.0
        %852 = vmatmul.mubr.f32.gmra.mxu0 %v772
        %v853 = vpop.f32.mrf.mxu0
        %v854 = vadd.f32 0.0, %v853
        %v855 = vpop.f32.mrf.mxu0
        %856 = vmatprep.mubr.f32.mxu0 0.0
        %857 = vmatmul.mubr.f32.gmra.mxu0 %v775
        %v858 = vpop.f32.mrf.mxu0
        %v859 = vadd.f32 0.0, %v858
        %v860 = vpop.f32.mrf.mxu0
        %861 = vdwg.mxu0
        %v862 = vld [vmem:[%s4] sm:$0xff]
        %v863 = vld [vmem:[%s4 + $0x8] sm:$0xff]
        %v864 = vld [vmem:[%s4 + $0x10] sm:$0xff]
        %v865 = vld [vmem:[%s4 + $0x18] sm:$0xff]
        %vm866 = vcmask 130048
        %v868 = vsel %vm866, %v862, 0
        %v871 = vsel %vm866, %v863, 0
        %v874 = vsel %vm866, %v864, 0
        %v877 = vsel %vm866, %v865, 0
        %879 = vmatprep.subr.mxu0 0.0
        %880 = vmatpush1.msra.mxu0 0.0
        %881 = vmatprep.subr.mxu0 0.0
        %882 = vmatpush1.msra.mxu0 0.0
        %883 = vmatprep.subr.mxu0 0.0
        %884 = vmatpush1.msra.mxu0 0.0
        %885 = vmatprep.subr.mxu0 0.0
        %886 = vmatpush1.msra.mxu0 0.0
        %887 = vmatprep.subr.mxu0 0.0
        %888 = vmatpush1.msra.mxu0 0.0
        %889 = vmatprep.subr.mxu0 0.0
        %890 = vmatpush1.msra.mxu0 0.0
        %891 = vmatprep.subr.mxu0 0.0
        %892 = vmatpush1.msra.mxu0 0.0
        %893 = vmatprep.subr.mxu0 0.0
        %894 = vmatpush1.msra.mxu0 0.0
        %895 = vmatprep.subr.mxu0 0.0
        %896 = vmatpush1.msra.mxu0 0.0
        %897 = vmatprep.subr.mxu0 0.0
        %898 = vmatpush1.msra.mxu0 0.0
        %899 = vmatprep.subr.mxu0 0.0
        %900 = vmatpush1.msra.mxu0 0.0
        %901 = vmatprep.subr.mxu0 0.0
        %902 = vmatpush1.msra.mxu0 0.0
        %903 = vmatprep.subr.mxu0 0.0
        %904 = vmatpush1.msra.mxu0 0.0
        %905 = vmatprep.subr.mxu0 0.0
        %906 = vmatpush1.msra.mxu0 0.0
        %907 = vmatprep.subr.mxu0 0.0
        %908 = vmatpush1.msra.mxu0 %v759
        %909 = vmatprep.subr.mxu0 0.0
        %910 = vmatpush1.msra.mxu0 %v758
        %911 = vmatprep.subr.mxu0 0.0
        %912 = vmatpush2.msra.mxu0 0.0
        %913 = vmatprep.subr.mxu0 0.0
        %914 = vmatpush2.msra.mxu0 0.0
        %915 = vmatprep.subr.mxu0 0.0
        %916 = vmatpush2.msra.mxu0 0.0
        %917 = vmatprep.subr.mxu0 0.0
        %918 = vmatpush2.msra.mxu0 0.0
        %919 = vmatprep.subr.mxu0 0.0
        %920 = vmatpush2.msra.mxu0 0.0
        %921 = vmatprep.subr.mxu0 0.0
        %922 = vmatpush2.msra.mxu0 0.0
        %923 = vmatprep.subr.mxu0 0.0
        %924 = vmatpush2.msra.mxu0 0.0
        %925 = vmatprep.subr.mxu0 0.0
        %926 = vmatpush2.msra.mxu0 0.0
        %927 = vmatprep.subr.mxu0 0.0
        %928 = vmatpush2.msra.mxu0 0.0
        %929 = vmatprep.subr.mxu0 0.0
        %930 = vmatpush2.msra.mxu0 0.0
        %931 = vmatprep.subr.mxu0 0.0
        %932 = vmatpush2.msra.mxu0 0.0
        %933 = vmatprep.subr.mxu0 0.0
        %934 = vmatpush2.msra.mxu0 0.0
        %935 = vmatprep.subr.mxu0 0.0
        %936 = vmatpush2.msra.mxu0 0.0
        %937 = vmatprep.subr.mxu0 0.0
        %938 = vmatpush2.msra.mxu0 0.0
        %939 = vmatprep.subr.mxu0 0.0
        %940 = vmatpush2.msra.mxu0 0.0
        %941 = vmatprep.subr.mxu0 0.0
        %942 = vmatpush2.msra.mxu0 0.0
        %943 = vmatprep.mubr.f32.mxu0 0.0
        %944 = vmatmul.mubr.f32.gmra.mxu0 %v868
        %v945 = vpop.f32.mrf.mxu0
        %v946 = vadd.f32 0.0, %v945
        %v947 = vpop.f32.mrf.mxu0
        %948 = vmatprep.mubr.f32.mxu0 0.0
        %949 = vmatmul.mubr.f32.gmra.mxu0 %v871
        %v950 = vpop.f32.mrf.mxu0
        %v951 = vadd.f32 0.0, %v950
        %v952 = vpop.f32.mrf.mxu0
        %953 = vmatprep.mubr.f32.mxu0 0.0
        %954 = vmatmul.mubr.f32.gmra.mxu0 %v874
        %v955 = vpop.f32.mrf.mxu0
        %v956 = vadd.f32 0.0, %v955
        %v957 = vpop.f32.mrf.mxu0
        %958 = vmatprep.mubr.f32.mxu0 0.0
        %959 = vmatmul.mubr.f32.gmra.mxu0 %v877
        %v960 = vpop.f32.mrf.mxu0
        %v961 = vadd.f32 0.0, %v960
        %v962 = vpop.f32.mrf.mxu0
        %963 = vdwg.mxu0
        %v964 = vld [vmem:[%s705] sm:$0xf]
        %v965 = vld [vmem:[%s705 + $0x4] sm:$0xf]
        %v966 = vld [vmem:[%s705 + $0x8] sm:$0xf]
        %v967 = vld [vmem:[%s705 + $0xc] sm:$0xf]
        %v968 = vunpack.c.l.bf16 %v964
        %v969 = vunpack.c.l.bf16 %v965
        %972 = vrot.lane.b32.xlu0 %v968, 32
        %v973 = vpop.permute.xlu0 %972
        %974 = vrot.lane.b32.xlu0 %v969, 32
        %v975 = vpop.permute.xlu0 %974
        %v978 = vsel %vm748, %v968, %v973
        %v979 = vsel %vm748, %v969, %v975
        %v980 = vunpack.c.l.bf16 %v966
        %v981 = vunpack.c.l.bf16 %v967
        %984 = vrot.lane.b32.xlu0 %v980, 32
        %v985 = vpop.permute.xlu0 %984
        %986 = vrot.lane.b32.xlu0 %v981, 32
        %v987 = vpop.permute.xlu0 %986
        %v990 = vsel %vm748, %v980, %v985
        %v991 = vsel %vm748, %v981, %v987
        %v992 = vmul.f32 %v844, %v844
        %v993 = vmul.f32 %v849, %v849
        %v994 = vmul.f32 %v854, %v854
        %v995 = vmul.f32 %v859, %v859
        %v996 = vsub.f32 %v992, %v994
        %v997 = vsub.f32 %v993, %v995
        %v998 = vmul.f32 %v996, 0.2
        %v999 = vmul.f32 %v997, 0.2
        %v1000 = vmul.f32 %v844, 2.0
        %v1001 = vmul.f32 %v849, 2.0
        %v1002 = vmul.f32 %v1000, %v854
        %v1003 = vmul.f32 %v1001, %v859
        %v1004 = vmul.f32 %v1002, 0.2
        %v1005 = vmul.f32 %v1003, 0.2
        %v1006 = vmul.f32 %v998, %v978
        %v1007 = vmul.f32 %v999, %v979
        %v1008 = vmul.f32 %v1004, %v990
        %v1009 = vmul.f32 %v1005, %v991
        %v1010 = vsub.f32 %v1006, %v1008
        %v1011 = vsub.f32 %v1007, %v1009
        %v1012 = vmul.f32 %v998, %v990
        %v1013 = vmul.f32 %v999, %v991
        %v1014 = vmul.f32 %v1004, %v978
        %v1015 = vmul.f32 %v1005, %v979
        %v1016 = vadd.f32 %v1012, %v1014
        %v1017 = vadd.f32 %v1013, %v1015
        %v1018 = vld [vmem:[%s710] sm:$0xf]
        %v1019 = vld [vmem:[%s710 + $0x4] sm:$0xf]
        %v1020 = vld [vmem:[%s710 + $0x8] sm:$0xf]
        %v1021 = vld [vmem:[%s710 + $0xc] sm:$0xf]
        %v1022 = vunpack.c.l.bf16 %v1018
        %v1023 = vunpack.c.l.bf16 %v1019
        %1026 = vrot.lane.b32.xlu0 %v1022, 32
        %v1027 = vpop.permute.xlu0 %1026
        %1028 = vrot.lane.b32.xlu0 %v1023, 32
        %v1029 = vpop.permute.xlu0 %1028
        %v1032 = vsel %vm748, %v1022, %v1027
        %v1033 = vsel %vm748, %v1023, %v1029
        %v1034 = vunpack.c.l.bf16 %v1020
        %v1035 = vunpack.c.l.bf16 %v1021
        %1038 = vrot.lane.b32.xlu0 %v1034, 32
        %v1039 = vpop.permute.xlu0 %1038
        %1040 = vrot.lane.b32.xlu0 %v1035, 32
        %v1041 = vpop.permute.xlu0 %1040
        %v1044 = vsel %vm748, %v1034, %v1039
        %v1045 = vsel %vm748, %v1035, %v1041
        %v1046 = vmul.f32 %v946, %v946
        %v1047 = vmul.f32 %v951, %v951
        %v1048 = vmul.f32 %v956, %v956
        %v1049 = vmul.f32 %v961, %v961
        %v1050 = vsub.f32 %v1046, %v1048
        %v1051 = vsub.f32 %v1047, %v1049
        %v1052 = vmul.f32 %v1050, 0.11111111
        %v1053 = vmul.f32 %v1051, 0.11111111
        %v1054 = vmul.f32 %v946, 2.0
        %v1055 = vmul.f32 %v951, 2.0
        %v1056 = vmul.f32 %v1054, %v956
        %v1057 = vmul.f32 %v1055, %v961
        %v1058 = vmul.f32 %v1056, 0.11111111
        %v1059 = vmul.f32 %v1057, 0.11111111
        %v1060 = vmul.f32 %v1052, %v1032
        %v1061 = vmul.f32 %v1053, %v1033
        %v1062 = vmul.f32 %v1058, %v1044
        %v1063 = vmul.f32 %v1059, %v1045
        %v1064 = vsub.f32 %v1060, %v1062
        %v1065 = vsub.f32 %v1061, %v1063
        %v1066 = vmul.f32 %v1052, %v1044
        %v1067 = vmul.f32 %v1053, %v1045
        %v1068 = vmul.f32 %v1058, %v1032
        %v1069 = vmul.f32 %v1059, %v1033
        %v1070 = vadd.f32 %v1066, %v1068
        %v1071 = vadd.f32 %v1067, %v1069
        %v1072 = vld [vmem:[%s598] sm:$0xf]
        %v1073 = vld [vmem:[%s598 + $0x4] sm:$0xf]
        %v1074 = vld [vmem:[%s598 + $0x8] sm:$0xf]
        %v1075 = vld [vmem:[%s598 + $0xc] sm:$0xf]
        %v1076 = vunpack.c.l.bf16 %v1072
        %v1077 = vunpack.c.l.bf16 %v1073
        %1080 = vrot.lane.b32.xlu0 %v1076, 32
        %v1081 = vpop.permute.xlu0 %1080
        %1082 = vrot.lane.b32.xlu0 %v1077, 32
        %v1083 = vpop.permute.xlu0 %1082
        %v1086 = vsel %vm748, %v1076, %v1081
        %v1087 = vsel %vm748, %v1077, %v1083
        %v1088 = vmul.f32 %v1064, %v1086
        %v1089 = vmul.f32 %v1065, %v1087
        %v1090 = vunpack.c.l.bf16 %v1074
        %v1091 = vunpack.c.l.bf16 %v1075
        %1094 = vrot.lane.b32.xlu0 %v1090, 32
        %v1095 = vpop.permute.xlu0 %1094
        %1096 = vrot.lane.b32.xlu0 %v1091, 32
        %v1097 = vpop.permute.xlu0 %1096
        %v1100 = vsel %vm748, %v1090, %v1095
        %v1101 = vsel %vm748, %v1091, %v1097
        %v1102 = vmul.f32 %v1070, %v1100
        %v1103 = vmul.f32 %v1071, %v1101
        %v1104 = vsub.f32 %v1088, %v1102
        %v1105 = vsub.f32 %v1089, %v1103
        %vm1106 = vcmask 523264
        %v1107 = vsel %vm1106, %v1104, 0.0
        %v1108 = vsel %vm1106, %v1105, 0.0
        %v1109 = vadd.f32 %v1107, %v1108
        %v1110 = vrot.slane %v1109, 4
        %v1111 = vadd.f32 %v1109, %v1110
        %v1112 = vrot.slane %v1111, 2
        %v1113 = vadd.f32 %v1111, %v1112
        %v1114 = vrot.slane %v1113, 1
        %v1115 = vadd.f32 %v1113, %v1114
        %v1116 = vmul.f32 %v1115, 0.11111111
        %1118 = vrot.lane.b32.xlu0 %v1116, 96
        %v1119 = vpop.permute.xlu0 %1118
        %vm1121 = vcmask 1040384
        %v1122 = vsel %vm1121, %v1116, %v1119
        %v1123 = vld [vmem:[%s715] sm:$0xf]
        %v1124 = vld [vmem:[%s715 + $0x4] sm:$0xf]
        %v1125 = vld [vmem:[%s715 + $0x8] sm:$0xf]
        %v1126 = vld [vmem:[%s715 + $0xc] sm:$0xf]
        %v1127 = vpack.c.bf16 %v1122, %v1122
        %v1128 = vlaneseq
        %v1129 = vshrl.u32 %v1128, 7
        %v1130 = vsub.s32 0, %v1129
        %v1131 = vrot.slane %v742, %v1130
        %v1136 = vunpack.c.l.b16 %v1123
        %v1137 = vunpack.c.l.b16 %v1124
        %v1138 = vunpack.c.l.b16 %v1125
        %v1139 = vunpack.c.l.b16 %v1126
        %v1140 = vpack.c.b16 %v1137, %v1136
        %v1141 = vpack.c.b16 %v1139, %v1138
        %v1145 = vsel %vm748, %v1127, 0
        %1147 = vmatprep.subr.bf16.mxu0 0
        %1148 = vmatpush1.bf16.msra.mxu0 0
        %1149 = vmatprep.subr.bf16.mxu0 0
        %1150 = vmatpush1.bf16.msra.mxu0 0
        %1151 = vmatprep.subr.bf16.mxu0 0
        %1152 = vmatpush1.bf16.msra.mxu0 0
        %1153 = vmatprep.subr.bf16.mxu0 0
        %1154 = vmatpush1.bf16.msra.mxu0 0
        %1155 = vmatprep.subr.bf16.mxu0 0
        %1156 = vmatpush1.bf16.msra.mxu0 0
        %1157 = vmatprep.subr.bf16.mxu0 0
        %1158 = vmatpush1.bf16.msra.mxu0 0
        %1159 = vmatprep.subr.bf16.mxu0 0
        %1160 = vmatpush1.bf16.msra.mxu0 %v1141
        %1161 = vmatprep.subr.bf16.mxu0 0
        %1162 = vmatpush1.bf16.msra.mxu0 %v1140
        %1163 = vmatprep.subr.bf16.mxu0 0
        %1164 = vmatpush2.bf16.msra.mxu0 0
        %1165 = vmatprep.subr.bf16.mxu0 0
        %1166 = vmatpush2.bf16.msra.mxu0 0
        %1167 = vmatprep.subr.bf16.mxu0 0
        %1168 = vmatpush2.bf16.msra.mxu0 0
        %1169 = vmatprep.subr.bf16.mxu0 0
        %1170 = vmatpush2.bf16.msra.mxu0 0
        %1171 = vmatprep.subr.bf16.mxu0 0
        %1172 = vmatpush2.bf16.msra.mxu0 0
        %1173 = vmatprep.subr.bf16.mxu0 0
        %1174 = vmatpush2.bf16.msra.mxu0 0
        %1175 = vmatprep.subr.bf16.mxu0 0
        %1176 = vmatpush2.bf16.msra.mxu0 0
        %1177 = vmatprep.subr.bf16.mxu0 0
        %1178 = vmatpush2.bf16.msra.mxu0 0
        %1179 = vmatprep.mubr.bf16.mxu0 0
        %1180 = vmatmul.mubr.bf16.gmra.mxu0 %v1145
        %v1181 = vpop.f32.mrf.mxu0
        %v1182 = vadd.f32 %v1131, %v1181
        %v1183 = vpop.f32.mrf.mxu0
        %v1184 = vpop.f32.mrf.mxu0
        %v1185 = vpop.f32.mrf.mxu0
        %1186 = vdwg.mxu0
        %v1188 = vrot.slane %v1182, 1
        %1189 = vrot.lane.b32.xlu0 %v1188, 32
        %v1190 = vpop.permute.xlu0 %1189
        %v1192 = vsel %vm748, %v1182, %v1190
        %v1193 = vlaneseq
        %v1194 = vshrl.u32 %v1193, 7
        %v1195 = vsub.s32 0, %v1194
        %v1196 = vrot.slane %v1192, %v1195
        %v1197 = vmul.f32 %v1010, %v1196
        %v1198 = vmul.f32 %v1011, %v1196
        %v1199 = vmul.f32 %v1016, %v1196
        %v1200 = vmul.f32 %v1017, %v1196
        %v1201 = vld [vmem:[%s607] sm:$0xf]
        %v1202 = vld [vmem:[%s607 + $0x4] sm:$0xf]
        %v1203 = vld [vmem:[%s607 + $0x8] sm:$0xf]
        %v1204 = vld [vmem:[%s607 + $0xc] sm:$0xf]
        %v1205 = vunpack.c.l.bf16 %v1201
        %v1206 = vunpack.c.l.bf16 %v1202
        %1209 = vrot.lane.b32.xlu0 %v1205, 32
        %v1210 = vpop.permute.xlu0 %1209
        %1211 = vrot.lane.b32.xlu0 %v1206, 32
        %v1212 = vpop.permute.xlu0 %1211
        %v1215 = vsel %vm748, %v1205, %v1210
        %v1216 = vsel %vm748, %v1206, %v1212
        %v1217 = vmul.f32 %v1197, %v1215
        %v1218 = vmul.f32 %v1198, %v1216
        %v1219 = vunpack.c.l.bf16 %v1203
        %v1220 = vunpack.c.l.bf16 %v1204
        %1223 = vrot.lane.b32.xlu0 %v1219, 32
        %v1224 = vpop.permute.xlu0 %1223
        %1225 = vrot.lane.b32.xlu0 %v1220, 32
        %v1226 = vpop.permute.xlu0 %1225
        %v1229 = vsel %vm748, %v1219, %v1224
        %v1230 = vsel %vm748, %v1220, %v1226
        %v1231 = vmul.f32 %v1199, %v1229
        %v1232 = vmul.f32 %v1200, %v1230
        %v1233 = vsub.f32 %v1217, %v1231
        %v1234 = vsub.f32 %v1218, %v1232
        %v1235 = vsel %vm1106, %v1233, 0.0
        %v1236 = vsel %vm1106, %v1234, 0.0
        %v1237 = vadd.f32 %v1235, %v1236
        %v1238 = vrot.slane %v1237, 4
        %v1239 = vadd.f32 %v1237, %v1238
        %v1240 = vrot.slane %v1239, 2
        %v1241 = vadd.f32 %v1239, %v1240
        %v1242 = vrot.slane %v1241, 1
        %v1243 = vadd.f32 %v1241, %v1242
        %v1244 = vmul.f32 %v1243, 0.2
        %1246 = vrot.lane.b32.xlu0 %v1244, 96
        %v1247 = vpop.permute.xlu0 %1246
        %v1249 = vsel %vm1121, %v1244, %v1247
        %s1250 = scalar_lea.vmem %s715, 16
        %v1251 = vld [vmem:[%s1250] sm:$0xf]
        %v1252 = vld [vmem:[%s1250 + $0x4] sm:$0xf]
        %v1253 = vld [vmem:[%s1250 + $0x8] sm:$0xf]
        %v1254 = vld [vmem:[%s1250 + $0xc] sm:$0xf]
        %v1255 = vpack.c.bf16 %v1249, %v1249
        %v1256 = vlaneseq
        %v1257 = vshrl.u32 %v1256, 7
        %v1258 = vsub.s32 1, %v1257
        %v1259 = vrot.slane %v742, %v1258
        %v1264 = vunpack.c.l.b16 %v1251
        %v1265 = vunpack.c.l.b16 %v1252
        %v1266 = vunpack.c.l.b16 %v1253
        %v1267 = vunpack.c.l.b16 %v1254
        %v1268 = vpack.c.b16 %v1265, %v1264
        %v1269 = vpack.c.b16 %v1267, %v1266
        %v1273 = vsel %vm748, %v1255, 0
        %1275 = vmatprep.subr.bf16.mxu0 0
        %1276 = vmatpush1.bf16.msra.mxu0 0
        %1277 = vmatprep.subr.bf16.mxu0 0
        %1278 = vmatpush1.bf16.msra.mxu0 0
        %1279 = vmatprep.subr.bf16.mxu0 0
        %1280 = vmatpush1.bf16.msra.mxu0 0
        %1281 = vmatprep.subr.bf16.mxu0 0
        %1282 = vmatpush1.bf16.msra.mxu0 0
        %1283 = vmatprep.subr.bf16.mxu0 0
        %1284 = vmatpush1.bf16.msra.mxu0 0
        %1285 = vmatprep.subr.bf16.mxu0 0
        %1286 = vmatpush1.bf16.msra.mxu0 0
        %1287 = vmatprep.subr.bf16.mxu0 0
        %1288 = vmatpush1.bf16.msra.mxu0 %v1269
        %1289 = vmatprep.subr.bf16.mxu0 0
        %1290 = vmatpush1.bf16.msra.mxu0 %v1268
        %1291 = vmatprep.subr.bf16.mxu0 0
        %1292 = vmatpush2.bf16.msra.mxu0 0
        %1293 = vmatprep.subr.bf16.mxu0 0
        %1294 = vmatpush2.bf16.msra.mxu0 0
        %1295 = vmatprep.subr.bf16.mxu0 0
        %1296 = vmatpush2.bf16.msra.mxu0 0
        %1297 = vmatprep.subr.bf16.mxu0 0
        %1298 = vmatpush2.bf16.msra.mxu0 0
        %1299 = vmatprep.subr.bf16.mxu0 0
        %1300 = vmatpush2.bf16.msra.mxu0 0
        %1301 = vmatprep.subr.bf16.mxu0 0
        %1302 = vmatpush2.bf16.msra.mxu0 0
        %1303 = vmatprep.subr.bf16.mxu0 0
        %1304 = vmatpush2.bf16.msra.mxu0 0
        %1305 = vmatprep.subr.bf16.mxu0 0
        %1306 = vmatpush2.bf16.msra.mxu0 0
        %1307 = vmatprep.mubr.bf16.mxu0 0
        %1308 = vmatmul.mubr.bf16.gmra.mxu0 %v1273
        %v1309 = vpop.f32.mrf.mxu0
        %v1310 = vadd.f32 %v1259, %v1309
        %v1311 = vpop.f32.mrf.mxu0
        %v1312 = vpop.f32.mrf.mxu0
        %v1313 = vpop.f32.mrf.mxu0
        %1314 = vdwg.mxu0
        %v1316 = vrot.slane %v1310, 1
        %1317 = vrot.lane.b32.xlu0 %v1316, 32
        %v1318 = vpop.permute.xlu0 %1317
        %v1320 = vsel %vm748, %v1310, %v1318
        %v1321 = vlaneseq
        %v1322 = vshrl.u32 %v1321, 7
        %v1323 = vsub.s32 0, %v1322
        %v1324 = vrot.slane %v1320, %v1323
        %v1325 = vmul.f32 %v1064, %v1324
        %v1326 = vmul.f32 %v1065, %v1324
        %v1327 = vmul.f32 %v1070, %v1324
        %v1328 = vmul.f32 %v1071, %v1324
        %v1329 = vld [vmem:[%s3] sm:$0xf]
        %v1330 = vpack.c.bf16 %v1198, %v1197
        %v1331 = vpack.c.bf16 %v1200, %v1199
        %v1333 = vsel %vm748, %v1329, 0
        %1335 = vmatprep.subr.bf16.mxu0 0
        %1336 = vmatpush1.bf16.msra.mxu0 0
        %1337 = vmatprep.subr.bf16.mxu0 0
        %1338 = vmatpush1.bf16.msra.mxu0 0
        %1339 = vmatprep.subr.bf16.mxu0 0
        %1340 = vmatpush1.bf16.msra.mxu0 0
        %1341 = vmatprep.subr.bf16.mxu0 0
        %1342 = vmatpush1.bf16.msra.mxu0 0
        %1343 = vmatprep.subr.bf16.mxu0 0
        %1344 = vmatpush1.bf16.msra.mxu0 0
        %1345 = vmatprep.subr.bf16.mxu0 0
        %1346 = vmatpush1.bf16.msra.mxu0 0
        %1347 = vmatprep.subr.bf16.mxu0 0
        %1348 = vmatpush1.bf16.msra.mxu0 %v1331
        %1349 = vmatprep.subr.bf16.mxu0 0
        %1350 = vmatpush1.bf16.msra.mxu0 %v1330
        %1351 = vmatprep.subr.bf16.mxu0 0
        %1352 = vmatpush2.bf16.msra.mxu0 0
        %1353 = vmatprep.subr.bf16.mxu0 0
        %1354 = vmatpush2.bf16.msra.mxu0 0
        %1355 = vmatprep.subr.bf16.mxu0 0
        %1356 = vmatpush2.bf16.msra.mxu0 0
        %1357 = vmatprep.subr.bf16.mxu0 0
        %1358 = vmatpush2.bf16.msra.mxu0 0
        %1359 = vmatprep.subr.bf16.mxu0 0
        %1360 = vmatpush2.bf16.msra.mxu0 0
        %1361 = vmatprep.subr.bf16.mxu0 0
        %1362 = vmatpush2.bf16.msra.mxu0 0
        %1363 = vmatprep.subr.bf16.mxu0 0
        %1364 = vmatpush2.bf16.msra.mxu0 0
        %1365 = vmatprep.subr.bf16.mxu0 0
        %1366 = vmatpush2.bf16.msra.mxu0 0
        %1367 = vmatprep.mubr.bf16.mxu0 0
        %1368 = vmatmul.mubr.bf16.gmra.mxu0 %v1333
        %v1369 = vpop.f32.mrf.mxu0
        %v1370 = vadd.f32 %v749, %v1369
        %v1371 = vpop.f32.mrf.mxu0
        %v1372 = vpop.f32.mrf.mxu0
        %v1373 = vpop.f32.mrf.mxu0
        %1374 = vdwg.mxu0
        %v1375 = vld [vmem:[#allocation7] sm:$0xf]
        %v1376 = vld [vmem:[#allocation7 + $0x4] sm:$0xf]
        %v1377 = vpack.c.bf16 %v1326, %v1325
        %v1378 = vpack.c.bf16 %v1328, %v1327
        %v1381 = vunpack.c.l.b16 %v1375
        %v1382 = vunpack.c.l.b16 %v1376
        %v1383 = vpack.c.b16 %v1382, %v1381
        %v1385 = vsel %vm748, %v1383, 0
        %1387 = vmatprep.subr.bf16.mxu0 0
        %1388 = vmatpush1.bf16.msra.mxu0 0
        %1389 = vmatprep.subr.bf16.mxu0 0
        %1390 = vmatpush1.bf16.msra.mxu0 0
        %1391 = vmatprep.subr.bf16.mxu0 0
        %1392 = vmatpush1.bf16.msra.mxu0 0
        %1393 = vmatprep.subr.bf16.mxu0 0
        %1394 = vmatpush1.bf16.msra.mxu0 0
        %1395 = vmatprep.subr.bf16.mxu0 0
        %1396 = vmatpush1.bf16.msra.mxu0 0
        %1397 = vmatprep.subr.bf16.mxu0 0
        %1398 = vmatpush1.bf16.msra.mxu0 0
        %1399 = vmatprep.subr.bf16.mxu0 0
        %1400 = vmatpush1.bf16.msra.mxu0 %v1378
        %1401 = vmatprep.subr.bf16.mxu0 0
        %1402 = vmatpush1.bf16.msra.mxu0 %v1377
        %1403 = vmatprep.subr.bf16.mxu0 0
        %1404 = vmatpush2.bf16.msra.mxu0 0
        %1405 = vmatprep.subr.bf16.mxu0 0
        %1406 = vmatpush2.bf16.msra.mxu0 0
        %1407 = vmatprep.subr.bf16.mxu0 0
        %1408 = vmatpush2.bf16.msra.mxu0 0
        %1409 = vmatprep.subr.bf16.mxu0 0
        %1410 = vmatpush2.bf16.msra.mxu0 0
        %1411 = vmatprep.subr.bf16.mxu0 0
        %1412 = vmatpush2.bf16.msra.mxu0 0
        %1413 = vmatprep.subr.bf16.mxu0 0
        %1414 = vmatpush2.bf16.msra.mxu0 0
        %1415 = vmatprep.subr.bf16.mxu0 0
        %1416 = vmatpush2.bf16.msra.mxu0 0
        %1417 = vmatprep.subr.bf16.mxu0 0
        %1418 = vmatpush2.bf16.msra.mxu0 0
        %1419 = vmatprep.mubr.bf16.mxu0 0
        %1420 = vmatmul.mubr.bf16.gmra.mxu0 %v1385
        %v1421 = vpop.f32.mrf.mxu0
        %v1422 = vadd.f32 %v758, %v1421
        %v1423 = vpop.f32.mrf.mxu0
        %v1424 = vpop.f32.mrf.mxu0
        %v1425 = vadd.f32 %v759, %v1424
        %v1426 = vpop.f32.mrf.mxu0
        %1427 = vdwg.mxu0
        %1429 = vrot.lane.b32.xlu0 %v1370, 96
        %v1430 = vpop.permute.xlu0 %1429
        %1434 = vrot.lane.b32.xlu0 %v1422, 96
        %v1435 = vpop.permute.xlu0 %1434
        %1436 = vrot.lane.b32.xlu0 %v1425, 96
        %v1437 = vpop.permute.xlu0 %1436
        %v1440 = vsel %vm748, %v1370, 0.0
        %1441 = vadd.xlane.f32.xlu0 %v1440
        %v1442 = vpop.xlane.xlu0 %1441
        %v1443 = vsel %vm748, %v1430, 0.0
        %1444 = vadd.xlane.f32.xlu0 %v1443
        %v1445 = vpop.xlane.xlu0 %1444
        %v1446 = vrcp.pop 32.0
        %v1447 = vmul.f32 %v1442, %v1446
        %v1448 = vmul.f32 %v1445, %v1446
        %v1449 = vsub.f32 %v1370, %v1447
        %v1450 = vsub.f32 %v1430, %v1448
        %v1451 = vmul.f32 %v1449, %v1449
        %v1452 = vmul.f32 %v1450, %v1450
        %v1453 = vsel %vm748, %v1451, 0.0
        %1454 = vadd.xlane.f32.xlu0 %v1453
        %v1455 = vpop.xlane.xlu0 %1454
        %v1456 = vsel %vm748, %v1452, 0.0
        %1457 = vadd.xlane.f32.xlu0 %v1456
        %v1458 = vpop.xlane.xlu0 %1457
        %v1459 = vmul.f32 %v1455, %v1446
        %v1460 = vmul.f32 %v1458, %v1446
        %v1461 = vadd.f32 %v1459, 1e-05
        %v1462 = vadd.f32 %v1460, 1e-05
        %v1463 = vrsqrt.pop %v1461
        %v1464 = vrsqrt.pop %v1462
        %v1465 = vmul.f32 %v1449, %v1463
        %v1466 = vmul.f32 %v1450, %v1464
        %v1467 = vlaneseq
        %v1468 = vshrl.u32 %v1467, 7
        %v1469 = vsub.s32 6, %v1468
        %v1470 = vrot.slane %v742, %v1469
        %v1471 = vmul.f32 %v1465, %v1470
        %v1472 = vmul.f32 %v1466, %v1470
        %v1473 = vlaneseq
        %v1474 = vshrl.u32 %v1473, 7
        %v1475 = vsub.s32 7, %v1474
        %v1476 = vrot.slane %v742, %v1475
        %v1477 = vadd.f32 %v1471, %v1476
        %v1478 = vadd.f32 %v1472, %v1476
        %s1479 = scalar_lea.vmem %s715, 32
        %v1480 = vld [vmem:[%s1479] sm:$0xf]
        %v1481 = vld [vmem:[%s1479 + $0x4] sm:$0xf]
        %v1482 = vld [vmem:[%s1479 + $0x8] sm:$0xf]
        %v1483 = vld [vmem:[%s1479 + $0xc] sm:$0xf]
        %v1484 = vpack.c.bf16 %v1478, %v1477
        %v1485 = vlaneseq
        %v1486 = vshrl.u32 %v1485, 7
        %v1487 = vsub.s32 2, %v1486
        %v1488 = vrot.slane %v742, %v1487
        %v1493 = vunpack.c.l.b16 %v1480
        %v1494 = vunpack.c.l.b16 %v1481
        %v1495 = vunpack.c.l.b16 %v1482
        %v1496 = vunpack.c.l.b16 %v1483
        %v1497 = vpack.c.b16 %v1494, %v1493
        %v1498 = vpack.c.b16 %v1496, %v1495
        %v1502 = vsel %vm748, %v1484, 0
        %1504 = vmatprep.subr.bf16.mxu0 0
        %1505 = vmatpush1.bf16.msra.mxu0 0
        %1506 = vmatprep.subr.bf16.mxu0 0
        %1507 = vmatpush1.bf16.msra.mxu0 0
        %1508 = vmatprep.subr.bf16.mxu0 0
        %1509 = vmatpush1.bf16.msra.mxu0 0
        %1510 = vmatprep.subr.bf16.mxu0 0
        %1511 = vmatpush1.bf16.msra.mxu0 0
        %1512 = vmatprep.subr.bf16.mxu0 0
        %1513 = vmatpush1.bf16.msra.mxu0 0
        %1514 = vmatprep.subr.bf16.mxu0 0
        %1515 = vmatpush1.bf16.msra.mxu0 0
        %1516 = vmatprep.subr.bf16.mxu0 0
        %1517 = vmatpush1.bf16.msra.mxu0 %v1498
        %1518 = vmatprep.subr.bf16.mxu0 0
        %1519 = vmatpush1.bf16.msra.mxu0 %v1497
        %1520 = vmatprep.subr.bf16.mxu0 0
        %1521 = vmatpush2.bf16.msra.mxu0 0
        %1522 = vmatprep.subr.bf16.mxu0 0
        %1523 = vmatpush2.bf16.msra.mxu0 0
        %1524 = vmatprep.subr.bf16.mxu0 0
        %1525 = vmatpush2.bf16.msra.mxu0 0
        %1526 = vmatprep.subr.bf16.mxu0 0
        %1527 = vmatpush2.bf16.msra.mxu0 0
        %1528 = vmatprep.subr.bf16.mxu0 0
        %1529 = vmatpush2.bf16.msra.mxu0 0
        %1530 = vmatprep.subr.bf16.mxu0 0
        %1531 = vmatpush2.bf16.msra.mxu0 0
        %1532 = vmatprep.subr.bf16.mxu0 0
        %1533 = vmatpush2.bf16.msra.mxu0 0
        %1534 = vmatprep.subr.bf16.mxu0 0
        %1535 = vmatpush2.bf16.msra.mxu0 0
        %1536 = vmatprep.mubr.bf16.mxu0 0
        %1537 = vmatmul.mubr.bf16.gmra.mxu0 %v1502
        %v1538 = vpop.f32.mrf.mxu0
        %v1539 = vadd.f32 %v1488, %v1538
        %v1540 = vpop.f32.mrf.mxu0
        %v1541 = vpop.f32.mrf.mxu0
        %v1542 = vadd.f32 %v1488, %v1541
        %v1543 = vpop.f32.mrf.mxu0
        %1544 = vdwg.mxu0
        %v1545 = vmul.f32 %v1539, 0.5
        %v1546 = vmul.f32 %v1542, 0.5
        %v1547 = vmul.f32 %v1539, 0.70710677
        %v1548 = vmul.f32 %v1542, 0.70710677
        %v1549 = verf.f32.pop %v1547
        %v1550 = verf.f32.pop %v1548
        %v1551 = vadd.f32 %v1549, 1.0
        %v1552 = vadd.f32 %v1550, 1.0
        %v1553 = vmul.f32 %v1545, %v1551
        %v1554 = vmul.f32 %v1546, %v1552
        %s1555 = scalar_lea.vmem %s715, 48
        %v1556 = vld [vmem:[%s1555] sm:$0xf]
        %v1557 = vld [vmem:[%s1555 + $0x4] sm:$0xf]
        %v1558 = vld [vmem:[%s1555 + $0x8] sm:$0xf]
        %v1559 = vld [vmem:[%s1555 + $0xc] sm:$0xf]
        %v1560 = vpack.c.bf16 %v1554, %v1553
        %v1561 = vlaneseq
        %v1562 = vshrl.u32 %v1561, 7
        %v1563 = vsub.s32 3, %v1562
        %v1564 = vrot.slane %v742, %v1563
        %v1569 = vunpack.c.l.b16 %v1556
        %v1570 = vunpack.c.l.b16 %v1557
        %v1571 = vunpack.c.l.b16 %v1558
        %v1572 = vunpack.c.l.b16 %v1559
        %v1573 = vpack.c.b16 %v1570, %v1569
        %v1574 = vpack.c.b16 %v1572, %v1571
        %v1578 = vsel %vm748, %v1560, 0
        %1580 = vmatprep.subr.bf16.mxu0 0
        %1581 = vmatpush1.bf16.msra.mxu0 0
        %1582 = vmatprep.subr.bf16.mxu0 0
        %1583 = vmatpush1.bf16.msra.mxu0 0
        %1584 = vmatprep.subr.bf16.mxu0 0
        %1585 = vmatpush1.bf16.msra.mxu0 0
        %1586 = vmatprep.subr.bf16.mxu0 0
        %1587 = vmatpush1.bf16.msra.mxu0 0
        %1588 = vmatprep.subr.bf16.mxu0 0
        %1589 = vmatpush1.bf16.msra.mxu0 0
        %1590 = vmatprep.subr.bf16.mxu0 0
        %1591 = vmatpush1.bf16.msra.mxu0 0
        %1592 = vmatprep.subr.bf16.mxu0 0
        %1593 = vmatpush1.bf16.msra.mxu0 %v1574
        %1594 = vmatprep.subr.bf16.mxu0 0
        %1595 = vmatpush1.bf16.msra.mxu0 %v1573
        %1596 = vmatprep.subr.bf16.mxu0 0
        %1597 = vmatpush2.bf16.msra.mxu0 0
        %1598 = vmatprep.subr.bf16.mxu0 0
        %1599 = vmatpush2.bf16.msra.mxu0 0
        %1600 = vmatprep.subr.bf16.mxu0 0
        %1601 = vmatpush2.bf16.msra.mxu0 0
        %1602 = vmatprep.subr.bf16.mxu0 0
        %1603 = vmatpush2.bf16.msra.mxu0 0
        %1604 = vmatprep.subr.bf16.mxu0 0
        %1605 = vmatpush2.bf16.msra.mxu0 0
        %1606 = vmatprep.subr.bf16.mxu0 0
        %1607 = vmatpush2.bf16.msra.mxu0 0
        %1608 = vmatprep.subr.bf16.mxu0 0
        %1609 = vmatpush2.bf16.msra.mxu0 0
        %1610 = vmatprep.subr.bf16.mxu0 0
        %1611 = vmatpush2.bf16.msra.mxu0 0
        %1612 = vmatprep.mubr.bf16.mxu0 0
        %1613 = vmatmul.mubr.bf16.gmra.mxu0 %v1578
        %v1614 = vpop.f32.mrf.mxu0
        %v1615 = vadd.f32 %v1564, %v1614
        %v1616 = vpop.f32.mrf.mxu0
        %v1617 = vpop.f32.mrf.mxu0
        %v1618 = vadd.f32 %v1564, %v1617
        %v1619 = vpop.f32.mrf.mxu0
        %1620 = vdwg.mxu0
        %v1621 = vadd.f32 %v1615, %v1477
        %v1622 = vadd.f32 %v1618, %v1478
        %v1623 = vsel %vm748, %v1621, 0.0
        %1624 = vadd.xlane.f32.xlu0 %v1623
        %v1625 = vpop.xlane.xlu0 %1624
        %v1626 = vsel %vm748, %v1622, 0.0
        %1627 = vadd.xlane.f32.xlu0 %v1626
        %v1628 = vpop.xlane.xlu0 %1627
        %v1629 = vmul.f32 %v1625, %v1446
        %v1630 = vmul.f32 %v1628, %v1446
        %v1631 = vsub.f32 %v1621, %v1629
        %v1632 = vsub.f32 %v1622, %v1630
        %v1633 = vmul.f32 %v1631, %v1631
        %v1634 = vmul.f32 %v1632, %v1632
        %v1635 = vsel %vm748, %v1633, 0.0
        %1636 = vadd.xlane.f32.xlu0 %v1635
        %v1637 = vpop.xlane.xlu0 %1636
        %v1638 = vsel %vm748, %v1634, 0.0
        %1639 = vadd.xlane.f32.xlu0 %v1638
        %v1640 = vpop.xlane.xlu0 %1639
        %v1641 = vmul.f32 %v1637, %v1446
        %v1642 = vmul.f32 %v1640, %v1446
        %v1643 = vadd.f32 %v1641, 1e-05
        %v1644 = vadd.f32 %v1642, 1e-05
        %v1645 = vrsqrt.pop %v1643
        %v1646 = vrsqrt.pop %v1644
        %v1647 = vmul.f32 %v1631, %v1645
        %v1648 = vmul.f32 %v1632, %v1646
        %v1649 = vlaneseq
        %v1650 = vshrl.u32 %v1649, 7
        %v1651 = vsub.s32 0, %v1650
        %v1652 = vrot.slane %v743, %v1651
        %v1653 = vmul.f32 %v1647, %v1652
        %v1654 = vmul.f32 %v1648, %v1652
        %v1655 = vlaneseq
        %v1656 = vshrl.u32 %v1655, 7
        %v1657 = vsub.s32 1, %v1656
        %v1658 = vrot.slane %v743, %v1657
        %v1659 = vadd.f32 %v1653, %v1658
        %v1660 = vadd.f32 %v1654, %v1658
        %v1661 = vsel %vm748, %v1422, 0.0
        %1662 = vadd.xlane.f32.xlu0 %v1661
        %v1663 = vpop.xlane.xlu0 %1662
        %v1664 = vsel %vm748, %v1425, 0.0
        %1665 = vadd.xlane.f32.xlu0 %v1664
        %v1666 = vpop.xlane.xlu0 %1665
        %v1667 = vsel %vm748, %v1435, 0.0
        %1668 = vadd.xlane.f32.xlu0 %v1667
        %v1669 = vpop.xlane.xlu0 %1668
        %v1670 = vsel %vm748, %v1437, 0.0
        %1671 = vadd.xlane.f32.xlu0 %v1670
        %v1672 = vpop.xlane.xlu0 %1671
        %v1673 = vmul.f32 %v1663, %v1446
        %v1674 = vmul.f32 %v1666, %v1446
        %v1675 = vmul.f32 %v1669, %v1446
        %v1676 = vmul.f32 %v1672, %v1446
        %v1677 = vsub.f32 %v1422, %v1673
        %v1678 = vsub.f32 %v1425, %v1674
        %v1679 = vsub.f32 %v1435, %v1675
        %v1680 = vsub.f32 %v1437, %v1676
        %v1681 = vmul.f32 %v1677, %v1677
        %v1682 = vmul.f32 %v1678, %v1678
        %v1683 = vmul.f32 %v1679, %v1679
        %v1684 = vmul.f32 %v1680, %v1680
        %v1685 = vsel %vm748, %v1681, 0.0
        %1686 = vadd.xlane.f32.xlu0 %v1685
        %v1687 = vpop.xlane.xlu0 %1686
        %v1688 = vsel %vm748, %v1682, 0.0
        %1689 = vadd.xlane.f32.xlu0 %v1688
        %v1690 = vpop.xlane.xlu0 %1689
        %v1691 = vsel %vm748, %v1683, 0.0
        %1692 = vadd.xlane.f32.xlu0 %v1691
        %v1693 = vpop.xlane.xlu0 %1692
        %v1694 = vsel %vm748, %v1684, 0.0
        %1695 = vadd.xlane.f32.xlu0 %v1694
        %v1696 = vpop.xlane.xlu0 %1695
        %v1697 = vmul.f32 %v1687, %v1446
        %v1698 = vmul.f32 %v1690, %v1446
        %v1699 = vmul.f32 %v1693, %v1446
        %v1700 = vmul.f32 %v1696, %v1446
        %v1701 = vadd.f32 %v1697, 1e-05
        %v1702 = vadd.f32 %v1698, 1e-05
        %v1703 = vadd.f32 %v1699, 1e-05
        %v1704 = vadd.f32 %v1700, 1e-05
        %v1705 = vrsqrt.pop %v1701
        %v1706 = vrsqrt.pop %v1702
        %v1707 = vrsqrt.pop %v1703
        %v1708 = vrsqrt.pop %v1704
        %v1709 = vmul.f32 %v1677, %v1705
        %v1710 = vmul.f32 %v1678, %v1706
        %v1711 = vmul.f32 %v1679, %v1707
        %v1712 = vmul.f32 %v1680, %v1708
        %v1713 = vlaneseq
        %v1714 = vshrl.u32 %v1713, 7
        %v1715 = vsub.s32 2, %v1714
        %v1716 = vrot.slane %v743, %v1715
        %v1717 = vmul.f32 %v1709, %v1716
        %v1718 = vmul.f32 %v1710, %v1716
        %v1719 = vmul.f32 %v1711, %v1716
        %v1720 = vmul.f32 %v1712, %v1716
        %v1721 = vlaneseq
        %v1722 = vshrl.u32 %v1721, 7
        %v1723 = vsub.s32 3, %v1722
        %v1724 = vrot.slane %v743, %v1723
        %v1725 = vadd.f32 %v1717, %v1724
        %v1726 = vadd.f32 %v1718, %v1724
        %v1727 = vadd.f32 %v1719, %v1724
        %v1728 = vadd.f32 %v1720, %v1724
        %s1729 = scalar_lea.vmem %s715, 64
        %v1730 = vld [vmem:[%s1729] sm:$0xf]
        %v1731 = vld [vmem:[%s1729 + $0x4] sm:$0xf]
        %v1732 = vld [vmem:[%s1729 + $0x8] sm:$0xf]
        %v1733 = vld [vmem:[%s1729 + $0xc] sm:$0xf]
        %v1734 = vpack.c.bf16 %v1726, %v1725
        %v1735 = vpack.c.bf16 %v1728, %v1727
        %v1736 = vlaneseq
        %v1737 = vshrl.u32 %v1736, 7
        %v1738 = vsub.s32 4, %v1737
        %v1739 = vrot.slane %v742, %v1738
        %v1744 = vunpack.c.l.b16 %v1730
        %v1745 = vunpack.c.l.b16 %v1731
        %v1746 = vunpack.c.l.b16 %v1732
        %v1747 = vunpack.c.l.b16 %v1733
        %v1748 = vpack.c.b16 %v1745, %v1744
        %v1749 = vpack.c.b16 %v1747, %v1746
        %v1753 = vsel %vm748, %v1734, 0
        %v1756 = vsel %vm748, %v1735, 0
        %1758 = vmatprep.subr.bf16.mxu0 0
        %1759 = vmatpush1.bf16.msra.mxu0 0
        %1760 = vmatprep.subr.bf16.mxu0 0
        %1761 = vmatpush1.bf16.msra.mxu0 0
        %1762 = vmatprep.subr.bf16.mxu0 0
        %1763 = vmatpush1.bf16.msra.mxu0 0
        %1764 = vmatprep.subr.bf16.mxu0 0
        %1765 = vmatpush1.bf16.msra.mxu0 0
        %1766 = vmatprep.subr.bf16.mxu0 0
        %1767 = vmatpush1.bf16.msra.mxu0 0
        %1768 = vmatprep.subr.bf16.mxu0 0
        %1769 = vmatpush1.bf16.msra.mxu0 0
        %1770 = vmatprep.subr.bf16.mxu0 0
        %1771 = vmatpush1.bf16.msra.mxu0 %v1749
        %1772 = vmatprep.subr.bf16.mxu0 0
        %1773 = vmatpush1.bf16.msra.mxu0 %v1748
        %1774 = vmatprep.subr.bf16.mxu0 0
        %1775 = vmatpush2.bf16.msra.mxu0 0
        %1776 = vmatprep.subr.bf16.mxu0 0
        %1777 = vmatpush2.bf16.msra.mxu0 0
        %1778 = vmatprep.subr.bf16.mxu0 0
        %1779 = vmatpush2.bf16.msra.mxu0 0
        %1780 = vmatprep.subr.bf16.mxu0 0
        %1781 = vmatpush2.bf16.msra.mxu0 0
        %1782 = vmatprep.subr.bf16.mxu0 0
        %1783 = vmatpush2.bf16.msra.mxu0 0
        %1784 = vmatprep.subr.bf16.mxu0 0
        %1785 = vmatpush2.bf16.msra.mxu0 0
        %1786 = vmatprep.subr.bf16.mxu0 0
        %1787 = vmatpush2.bf16.msra.mxu0 0
        %1788 = vmatprep.subr.bf16.mxu0 0
        %1789 = vmatpush2.bf16.msra.mxu0 0
        %1790 = vmatprep.mubr.bf16.mxu0 0
        %1791 = vmatmul.mubr.bf16.gmra.mxu0 %v1753
        %v1792 = vpop.f32.mrf.mxu0
        %v1793 = vadd.f32 %v1739, %v1792
        %v1794 = vpop.f32.mrf.mxu0
        %v1795 = vpop.f32.mrf.mxu0
        %v1796 = vadd.f32 %v1739, %v1795
        %v1797 = vpop.f32.mrf.mxu0
        %1798 = vmatprep.mubr.bf16.mxu0 0
        %1799 = vmatmul.mubr.bf16.gmra.mxu0 %v1756
        %v1800 = vpop.f32.mrf.mxu0
        %v1801 = vadd.f32 %v1739, %v1800
        %v1802 = vpop.f32.mrf.mxu0
        %v1803 = vpop.f32.mrf.mxu0
        %v1804 = vadd.f32 %v1739, %v1803
        %v1805 = vpop.f32.mrf.mxu0
        %1806 = vdwg.mxu0
        %v1807 = vmul.f32 %v1793, 0.5
        %v1808 = vmul.f32 %v1796, 0.5
        %v1809 = vmul.f32 %v1801, 0.5
        %v1810 = vmul.f32 %v1804, 0.5
        %v1811 = vmul.f32 %v1793, 0.70710677
        %v1812 = vmul.f32 %v1796, 0.70710677
        %v1813 = vmul.f32 %v1801, 0.70710677
        %v1814 = vmul.f32 %v1804, 0.70710677
        %v1815 = verf.f32.pop %v1811
        %v1816 = verf.f32.pop %v1812
        %v1817 = verf.f32.pop %v1813
        %v1818 = verf.f32.pop %v1814
        %v1819 = vadd.f32 %v1815, 1.0
        %v1820 = vadd.f32 %v1816, 1.0
        %v1821 = vadd.f32 %v1817, 1.0
        %v1822 = vadd.f32 %v1818, 1.0
        %v1823 = vmul.f32 %v1807, %v1819
        %v1824 = vmul.f32 %v1808, %v1820
        %v1825 = vmul.f32 %v1809, %v1821
        %v1826 = vmul.f32 %v1810, %v1822
        %s1827 = scalar_lea.vmem %s715, 80
        %v1828 = vld [vmem:[%s1827] sm:$0xf]
        %v1829 = vld [vmem:[%s1827 + $0x4] sm:$0xf]
        %v1830 = vld [vmem:[%s1827 + $0x8] sm:$0xf]
        %v1831 = vld [vmem:[%s1827 + $0xc] sm:$0xf]
        %v1832 = vpack.c.bf16 %v1824, %v1823
        %v1833 = vpack.c.bf16 %v1826, %v1825
        %v1834 = vlaneseq
        %v1835 = vshrl.u32 %v1834, 7
        %v1836 = vsub.s32 5, %v1835
        %v1837 = vrot.slane %v742, %v1836
        %v1842 = vunpack.c.l.b16 %v1828
        %v1843 = vunpack.c.l.b16 %v1829
        %v1844 = vunpack.c.l.b16 %v1830
        %v1845 = vunpack.c.l.b16 %v1831
        %v1846 = vpack.c.b16 %v1843, %v1842
        %v1847 = vpack.c.b16 %v1845, %v1844
        %v1851 = vsel %vm748, %v1832, 0
        %v1854 = vsel %vm748, %v1833, 0
        %1856 = vmatprep.subr.bf16.mxu0 0
        %1857 = vmatpush1.bf16.msra.mxu0 0
        %1858 = vmatprep.subr.bf16.mxu0 0
        %1859 = vmatpush1.bf16.msra.mxu0 0
        %1860 = vmatprep.subr.bf16.mxu0 0
        %1861 = vmatpush1.bf16.msra.mxu0 0
        %1862 = vmatprep.subr.bf16.mxu0 0
        %1863 = vmatpush1.bf16.msra.mxu0 0
        %1864 = vmatprep.subr.bf16.mxu0 0
        %1865 = vmatpush1.bf16.msra.mxu0 0
        %1866 = vmatprep.subr.bf16.mxu0 0
        %1867 = vmatpush1.bf16.msra.mxu0 0
        %1868 = vmatprep.subr.bf16.mxu0 0
        %1869 = vmatpush1.bf16.msra.mxu0 %v1847
        %1870 = vmatprep.subr.bf16.mxu0 0
        %1871 = vmatpush1.bf16.msra.mxu0 %v1846
        %1872 = vmatprep.subr.bf16.mxu0 0
        %1873 = vmatpush2.bf16.msra.mxu0 0
        %1874 = vmatprep.subr.bf16.mxu0 0
        %1875 = vmatpush2.bf16.msra.mxu0 0
        %1876 = vmatprep.subr.bf16.mxu0 0
        %1877 = vmatpush2.bf16.msra.mxu0 0
        %1878 = vmatprep.subr.bf16.mxu0 0
        %1879 = vmatpush2.bf16.msra.mxu0 0
        %1880 = vmatprep.subr.bf16.mxu0 0
        %1881 = vmatpush2.bf16.msra.mxu0 0
        %1882 = vmatprep.subr.bf16.mxu0 0
        %1883 = vmatpush2.bf16.msra.mxu0 0
        %1884 = vmatprep.subr.bf16.mxu0 0
        %1885 = vmatpush2.bf16.msra.mxu0 0
        %1886 = vmatprep.subr.bf16.mxu0 0
        %1887 = vmatpush2.bf16.msra.mxu0 0
        %1888 = vmatprep.mubr.bf16.mxu0 0
        %1889 = vmatmul.mubr.bf16.gmra.mxu0 %v1851
        %v1890 = vpop.f32.mrf.mxu0
        %v1891 = vadd.f32 %v1837, %v1890
        %v1892 = vpop.f32.mrf.mxu0
        %v1893 = vpop.f32.mrf.mxu0
        %v1894 = vadd.f32 %v1837, %v1893
        %v1895 = vpop.f32.mrf.mxu0
        %1896 = vmatprep.mubr.bf16.mxu0 0
        %1897 = vmatmul.mubr.bf16.gmra.mxu0 %v1854
        %v1898 = vpop.f32.mrf.mxu0
        %v1899 = vadd.f32 %v1837, %v1898
        %v1900 = vpop.f32.mrf.mxu0
        %v1901 = vpop.f32.mrf.mxu0
        %v1902 = vadd.f32 %v1837, %v1901
        %v1903 = vpop.f32.mrf.mxu0
        %1904 = vdwg.mxu0
        %v1905 = vadd.f32 %v1891, %v1725
        %v1906 = vadd.f32 %v1894, %v1726
        %v1907 = vadd.f32 %v1899, %v1727
        %v1908 = vadd.f32 %v1902, %v1728
        %v1909 = vsel %vm748, %v1905, 0.0
        %1910 = vadd.xlane.f32.xlu0 %v1909
        %v1911 = vpop.xlane.xlu0 %1910
        %v1912 = vsel %vm748, %v1906, 0.0
        %1913 = vadd.xlane.f32.xlu0 %v1912
        %v1914 = vpop.xlane.xlu0 %1913
        %v1915 = vsel %vm748, %v1907, 0.0
        %1916 = vadd.xlane.f32.xlu0 %v1915
        %v1917 = vpop.xlane.xlu0 %1916
        %v1918 = vsel %vm748, %v1908, 0.0
        %1919 = vadd.xlane.f32.xlu0 %v1918
        %v1920 = vpop.xlane.xlu0 %1919
        %v1921 = vmul.f32 %v1911, %v1446
        %v1922 = vmul.f32 %v1914, %v1446
        %v1923 = vmul.f32 %v1917, %v1446
        %v1924 = vmul.f32 %v1920, %v1446
        %v1925 = vsub.f32 %v1905, %v1921
        %v1926 = vsub.f32 %v1906, %v1922
        %v1927 = vsub.f32 %v1907, %v1923
        %v1928 = vsub.f32 %v1908, %v1924
        %v1929 = vmul.f32 %v1925, %v1925
        %v1930 = vmul.f32 %v1926, %v1926
        %v1931 = vmul.f32 %v1927, %v1927
        %v1932 = vmul.f32 %v1928, %v1928
        %v1933 = vsel %vm748, %v1929, 0.0
        %1934 = vadd.xlane.f32.xlu0 %v1933
        %v1935 = vpop.xlane.xlu0 %1934
        %v1936 = vsel %vm748, %v1930, 0.0
        %1937 = vadd.xlane.f32.xlu0 %v1936
        %v1938 = vpop.xlane.xlu0 %1937
        %v1939 = vsel %vm748, %v1931, 0.0
        %1940 = vadd.xlane.f32.xlu0 %v1939
        %v1941 = vpop.xlane.xlu0 %1940
        %v1942 = vsel %vm748, %v1932, 0.0
        %1943 = vadd.xlane.f32.xlu0 %v1942
        %v1944 = vpop.xlane.xlu0 %1943
        %v1945 = vmul.f32 %v1935, %v1446
        %v1946 = vmul.f32 %v1938, %v1446
        %v1947 = vmul.f32 %v1941, %v1446
        %v1948 = vmul.f32 %v1944, %v1446
        %v1949 = vadd.f32 %v1945, 1e-05
        %v1950 = vadd.f32 %v1946, 1e-05
        %v1951 = vadd.f32 %v1947, 1e-05
        %v1952 = vadd.f32 %v1948, 1e-05
        %v1953 = vrsqrt.pop %v1949
        %v1954 = vrsqrt.pop %v1950
        %v1955 = vrsqrt.pop %v1951
        %v1956 = vrsqrt.pop %v1952
        %v1957 = vmul.f32 %v1925, %v1953
        %v1958 = vmul.f32 %v1926, %v1954
        %v1959 = vmul.f32 %v1927, %v1955
        %v1960 = vmul.f32 %v1928, %v1956
        %v1961 = vlaneseq
        %v1962 = vshrl.u32 %v1961, 7
        %v1963 = vsub.s32 4, %v1962
        %v1964 = vrot.slane %v743, %v1963
        %v1965 = vmul.f32 %v1957, %v1964
        %v1966 = vmul.f32 %v1958, %v1964
        %v1967 = vmul.f32 %v1959, %v1964
        %v1968 = vmul.f32 %v1960, %v1964
        %v1969 = vlaneseq
        %v1970 = vshrl.u32 %v1969, 7
        %v1971 = vsub.s32 5, %v1970
        %v1972 = vrot.slane %v743, %v1971
        %v1973 = vadd.f32 %v1965, %v1972
        %v1974 = vadd.f32 %v1966, %v1972
        %v1975 = vadd.f32 %v1967, %v1972
        %v1976 = vadd.f32 %v1968, %v1972
        %1977 = vst.msk [vmem:[%s691] sm:$0xff] %vm748, %v1659
        %1978 = vst.msk [vmem:[%s691 + $0x8] sm:$0xff] %vm748, %v1660
        %1979 = vst.msk [vmem:[%s698] sm:$0xff] %vm748, %v1973
        %1980 = vst.msk [vmem:[%s698 + $0x8] sm:$0xff] %vm748, %v1974
        %1981 = vst.msk [vmem:[%s698 + $0x10] sm:$0xff] %vm748, %v1975
        %1982 = vst.msk [vmem:[%s698 + $0x18] sm:$0xff] %vm748, %v1976
        %s1983 = sand.u32 %s355, 1
        %s1984 = scalar_lea.sflag [#allocation4], %s1983
        %s1985 = sand.u32 %s355, 1
        %s1986 = smul.addr %s1985, 16
        %s1987 = scalar_lea.vmem [#allocation13], %s1986
        %s1988 = sand.u32 %s381, 1
        %s1989 = scalar_lea.sflag [#allocation15], %s1988
        %s1990 = sand.u32 %s381, 1
        %s1991 = smul.addr %s1990, 32
        %s1992 = scalar_lea.vmem [#allocation14], %s1991
        // Predicated region
        $region97: #{tpu_custom_call.1} parent=67 // pred_check
          %p1993 = pneg %p365
        $region98: #{tpu_custom_call.1} parent=67 // pred_check_branch
          %1995 = sbr.rel (%p1993) target = $region100
        $region99: #{tpu_custom_call.1} parent=67 // pred_region
          %s1996 = smul.u32 2, %s47
          %s1998 = ssub.s32 256, 256
          %1999 = vsyncadd %s1984, %s1998
          %s2000 = smul.addr %s1996, 128
          %s2001 = scalar_lea.hbm %s12, %s2000
          %s2002 = sshll.u32 %s1987, 4
          %s2003 = int_to_ptr.vmem [resolvable:$true] %s2002
          %2008 = dma.vmem_to_hbm [thread:$0]  %s2003, 256, %s2001, %s1984, 128, 128, 8
        $region100: #{tpu_custom_call.1} parent=67 // pred_fallthru
          _
        // Predicated region
        $region101: #{tpu_custom_call.1} parent=67 // pred_check
          %p2009 = pneg %p391
        $region102: #{tpu_custom_call.1} parent=67 // pred_check_branch
          %2011 = sbr.rel (%p2009) target = $region104
        $region103: #{tpu_custom_call.1} parent=67 // pred_region
          %s2012 = smul.u32 2, %s47
          %s2014 = ssub.s32 512, 512
          %2015 = vsyncadd %s1989, %s2014
          %s2016 = smul.addr %s2012, 2
          %s2017 = smul.addr %s2016, 128
          %s2018 = scalar_lea.hbm %s13, %s2017
          %s2019 = sshll.u32 %s1992, 4
          %s2020 = int_to_ptr.vmem [resolvable:$true] %s2019
          %2025 = dma.vmem_to_hbm [thread:$0]  %s2020, 512, %s2018, %s1989, 128, 128, 8
        $region104: #{tpu_custom_call.1} parent=67 // pred_fallthru
          _
      $region68: #{tpu_custom_call.1} parent=5 // pred_fallthru
        _
      %p2026 = scmp.le.s32.totalorder 2, %s38
      // Predicated region
      $region105: #{tpu_custom_call.1} parent=5 // pred_check
        %p2027 = pneg %p2026
      $region106: #{tpu_custom_call.1} parent=5 // pred_check_branch
        %2029 = sbr.rel (%p2027) target = $region108
      $region107: #{tpu_custom_call.1} parent=5 // pred_region
        %s2030 = ssub.s32 %s38, 2
        // Predicated region
        $region109: #{tpu_custom_call.1} parent=107 // pred_check
          %p2031 = pneg %p371
        $region110: #{tpu_custom_call.1} parent=107 // pred_check_branch
          %2033 = sbr.rel (%p2031) target = $region112
        $region111: #{tpu_custom_call.1} parent=107 // pred_region
          %s2034 = sand.u32 %s356, 1
          %s2035 = scalar_lea.sflag [#allocation4], %s2034
          %s2036 = sand.u32 %s356, 1
          %s2037 = smul.addr %s2036, 16
          %s2038 = scalar_lea.vmem [#allocation13], %s2037
          %2039 = dma.done %s2035, 256
        $region112: #{tpu_custom_call.1} parent=107 // pred_fallthru
          _
        // Predicated region
        $region113: #{tpu_custom_call.1} parent=107 // pred_check
          %p2040 = pneg %p397
        $region114: #{tpu_custom_call.1} parent=107 // pred_check_branch
          %2042 = sbr.rel (%p2040) target = $region116
        $region115: #{tpu_custom_call.1} parent=107 // pred_region
          %s2043 = sand.u32 %s382, 1
          %s2044 = scalar_lea.sflag [#allocation15], %s2043
          %s2045 = sand.u32 %s382, 1
          %s2046 = smul.addr %s2045, 32
          %s2047 = scalar_lea.vmem [#allocation14], %s2046
          %2048 = dma.done %s2044, 512
        $region116: #{tpu_custom_call.1} parent=107 // pred_fallthru
          _
      $region108: #{tpu_custom_call.1} parent=5 // pred_fallthru
        _
    $region6: #{tpu_custom_call.1} parent=1 // loop_footer
      %s42 = sadd.s32 1, %s38
    $region7: #{tpu_custom_call.1} parent=1 // loop_footer_branch
      %37 = sbr.rel target = $region3
    $region8: #{tpu_custom_call.1} parent=1 // loop_exit
      _
    %2049 = vsyncpa [#allocation3], 1
    %s2050 = scalar_lea.sflag [#allocation3], 1
    %2051 = vsyncpa %s2050, 1
    %2052 = vsyncpa [#allocation6], 1
    %s2053 = scalar_lea.sflag [#allocation6], 1
    %2054 = vsyncpa %s2053, 1
    %2055 = vsyncpa [#allocation9], 1
    %s2056 = scalar_lea.sflag [#allocation9], 1
    %2057 = vsyncpa %s2056, 1
    %2058 = vsyncpa [#allocation12], 1
    %s2059 = scalar_lea.sflag [#allocation12], 1
    %2060 = vsyncpa %s2059, 1
    %2061 = vsyncpa [#allocation4], 1
    %s2062 = scalar_lea.sflag [#allocation4], 1
    %2063 = vsyncpa %s2062, 1
    %2064 = vsyncpa [#allocation15], 1
    %s2065 = scalar_lea.sflag [#allocation15], 1
    %2066 = vsyncpa %s2065, 1

</llo_original>
